<compile_context>
chip_gen: v7x
topology: tpu7x:2x2x1
jax: 0.10.0
libtpu: 0.0.40
codegen_flags: <defaults>
</compile_context>

<pallas_src>
import jax
import jax.numpy as jnp
from jax.experimental import pallas as pl
from jax.experimental.pallas import tpu as pltpu

# ---------------- configuration consistent with the module ----------------
B = 2             # batch
L = 16            # sequence length
E = 32            # embed_size == word_rep.feature_size
F = 32            # args.num_filter_maps
ATTN_D = 256      # hardcoded in AttentionLayer
C = 8             # args.class_nums
FFN = 128         # ffn_size (hardcoded)
VOCAB = 50        # len(dicts['w2ind']) + 2
VPAD = 64         # padded vocab (one-hot rows)
FILTER_SIZES = (3, 5)          # args.filter_size = "3,5"
PMAX = max(FILTER_SIZES) // 2  # 2
LP = L + 2 * PMAX              # per-batch padded length (20)
NSHIFT = 2 * PMAX + 1          # distinct conv shifts (5)
OUTW = B * LP                  # batched conv-output width (40)
SLAB_IDS_W = 2 * PMAX + B * LP # id-slab width (44)
KCONV = 256                    # padded K of the fused conv matmul (5*E + bias + pad)

# narrow weight slab (64 lanes, bf16) row offsets
OFF_ATTN = 0                   # (2*ATTN_D, 2F) block-diag attention W
OFF_W1T = OFF_ATTN + 2 * ATTN_D      # 512: final1.weight (FFN, 2F)
OFF_W2T = OFF_W1T + FFN              # 640: final2.weight^T (FFN, C)
OFF_B1 = OFF_W2T + FFN               # 768: final1.bias as a column (FFN, 1)
OFF_B2 = OFF_B1 + FFN                # 896: final2.bias row (1, C)
R_N = OFF_B2 + 16                    # 912 (multiple of 16 for bf16 packing)

# wide weight slab (512 lanes, bf16) row offsets
OFF_CONV = 2 * C               # 16: fused conv weight (2F, KCONV); rows [0,16) = U block-diag
R_W = OFF_CONV + 2 * F         # 80

F32 = jnp.float32
BF16 = jnp.bfloat16


def _multicnn_kernel(ids_ref, tgt_ref, embT_ref, slabN_ref, slabW_ref,
                     yhat_ref, loss_ref):
    # ---- in-kernel embedding lookup: exact one-hot matmul (f32) --------------
    ids = ids_ref[...]                                              # (1, 44) int32
    vocab_iota = jax.lax.broadcasted_iota(jnp.int32, (VPAD, SLAB_IDS_W), 0)
    onehot = (vocab_iota == ids).astype(F32)                        # (64, 44); id=-1 -> zero col
    x_slab = jnp.dot(embT_ref[...], onehot,
                     preferred_element_type=F32)                    # (E, 44)

    # ---- im2col: 5 lane-shifted slices + bias-one rows, one fused conv matmul
    xs = x_slab.astype(BF16)
    taps = [xs[:, d:d + OUTW] for d in range(NSHIFT)]               # 5 x (E, 40)
    x_aug = jnp.concatenate(
        taps + [jnp.ones((8, OUTW), BF16),
                jnp.zeros((KCONV - NSHIFT * E - 8, OUTW), BF16)],
        axis=0)                                                     # (256, 40)
    w_conv = slabW_ref[OFF_CONV:OFF_CONV + 2 * F, 0:KCONV]          # (2F, 256) bf16
    h = jnp.tanh(jnp.dot(w_conv, x_aug,
                         preferred_element_type=F32))               # (2F, 40)  both branches

    # ---- block-diagonal attention over the batched slab ----------------------
    hb = h.astype(BF16)
    w_attn = slabN_ref[OFF_ATTN:OFF_ATTN + 2 * ATTN_D, :]           # (512, 2F) bf16
    z = jnp.tanh(jnp.dot(w_attn, hb, preferred_element_type=F32))   # (512, 40)
    u_bd = slabW_ref[0:2 * C, :]                                    # (2C, 512) bf16
    s_all = jnp.dot(u_bd, z.astype(BF16),
                    preferred_element_type=F32)                     # (2C, 40)

    # ---- tail weights hoisted out of the per-batch loop ----------------------
    w1T = slabN_ref[OFF_W1T:OFF_W1T + FFN, :]                       # (FFN, 2F) bf16
    w2T = slabN_ref[OFF_W2T:OFF_W2T + FFN, 0:C].astype(F32)         # (FFN, C)
    b1c = slabN_ref[OFF_B1:OFF_B1 + FFN, 0:1].astype(F32)           # (FFN, 1)
    b2r = slabN_ref[OFF_B2:OFF_B2 + 1, 0:C].astype(F32)             # (1, C)
    branch_mask = jax.lax.broadcasted_iota(jnp.int32, (2 * F, C), 0) < F

    rows = []
    for b in range(B):                                              # B=2, static unroll
        lo = b * LP + PMAX                                          # first valid column
        s_b = s_all[:, lo:lo + L]                                   # (2C, L)
        s_b = s_b - jnp.max(s_b, axis=-1, keepdims=True)            # softmax(dim=2)
        p = jnp.exp(s_b)
        a_b = p / jnp.sum(p, axis=-1, keepdims=True)                # (2C, L)
        h_b = hb[:, lo:lo + L]                                      # (2F, L) bf16
        # q[f, r] = sum_t h_b[f, t] * a_b[r, t]  (== V^T for both branches)
        q = jax.lax.dot_general(h_b, a_b.astype(BF16),
                                (((1,), (1,)), ((), ())),
                                preferred_element_type=F32)         # (2F, 2C)
        v_catT = jnp.where(branch_mask, q[:, 0:C], q[:, C:2 * C])   # (2F, C) == cat(V0,V1)^T
        ffnT = jnp.dot(w1T, v_catT.astype(BF16),
                       preferred_element_type=F32) + b1c            # (FFN, C)
        v1T = jnp.maximum(ffnT, 0.0)                                # relu(final1(V))^T
        # y[c] = sum_k final2.weight[c,k] * V1[c,k] + final2.bias[c]
        y_b = jnp.sum(w2T * v1T, axis=0, keepdims=True) + b2r       # (1, C)
        rows.append(y_b)

    y_hat = jnp.concatenate(rows, axis=0)                           # (B, C)
    yhat_ref[...] = y_hat                                           # single store

    # BCEWithLogitsLoss, mean reduction (numerically stable)
    tgt = tgt_ref[...]                                              # (B, C)
    le = (jnp.maximum(y_hat, 0.0) - y_hat * tgt
          + jnp.log(1.0 + jnp.exp(-jnp.abs(y_hat))))
    loss_ref[...] = jnp.sum(jnp.sum(le, axis=1, keepdims=True),
                            axis=0, keepdims=True) * (1.0 / (B * C))


def _full_spec(shape):
    nd = len(shape)
    return pl.BlockSpec(shape, lambda i, _nd=nd: (0,) * _nd)


def multicnn_forward(params, x_ids, target):
    # id slab: [-1]*4 | batch0 ids | [-1]*4 | batch1 ids | [-1]*4  -> (1, 44)
    pieces = [jnp.full((2 * PMAX,), -1, jnp.int32)]
    for b in range(B):
        pieces.append(x_ids[b].astype(jnp.int32))
        pieces.append(jnp.full((2 * PMAX,), -1, jnp.int32))
    ids_slab = jnp.concatenate(pieces)[None, :]                     # (1, 44)
    tgt = target.astype(jnp.float32)                                # (B, C)

    inputs = (ids_slab, tgt, params["embT"], params["slabN"], params["slabW"])
    y_hat, loss = pl.pallas_call(
        _multicnn_kernel,
        grid=(1,),
        in_specs=[_full_spec(a.shape) for a in inputs],
        out_specs=(_full_spec((B, C)), _full_spec((1, 1))),
        out_shape=(jax.ShapeDtypeStruct((B, C), jnp.float32),
                   jax.ShapeDtypeStruct((1, 1), jnp.float32)),
        compiler_params=pltpu.CompilerParams(dimension_semantics=("arbitrary",)),
    )(*inputs)
    return y_hat, loss[0, 0]


# ------------------------------ parameter init ------------------------------
def _xavier_uniform(key, shape):
    if len(shape) == 2:
        fan_out, fan_in = shape
    else:  # conv weight (out, in, k)
        rf = shape[2]
        fan_out, fan_in = shape[0] * rf, shape[1] * rf
    bound = (6.0 / (fan_in + fan_out)) ** 0.5
    return jax.random.uniform(key, shape, jnp.float32, -bound, bound)


def _uniform(key, shape, bound):
    return jax.random.uniform(key, shape, jnp.float32, -bound, bound)


def init_params(key):
    keys = jax.random.split(key, 16)

    # --- torch-equivalent parameter tensors (f32) ---
    embed = 0.1 * jax.random.normal(keys[0], (VOCAB, E), jnp.float32)
    embed = embed.at[0].set(0.0)                                    # padding_idx=0

    conv_w, conv_b = [], []
    for i, k in enumerate(FILTER_SIZES):
        conv_w.append(_xavier_uniform(keys[1 + i], (F, E, k)))      # torch Conv1d layout
        conv_b.append(_uniform(keys[3 + i], (F,), (1.0 / (E * k)) ** 0.5))
    attn_w = [_xavier_uniform(keys[5 + i], (ATTN_D, F)) for i in range(2)]
    attn_u = [_xavier_uniform(keys[7 + i], (C, ATTN_D)) for i in range(2)]
    w1 = _xavier_uniform(keys[9], (FFN, 2 * F))                     # final1.weight
    b1 = _uniform(keys[10], (FFN,), (1.0 / (2 * F)) ** 0.5)
    w2 = _xavier_uniform(keys[11], (C, FFN))                        # final2.weight
    b2 = _uniform(keys[12], (C,), (1.0 / FFN) ** 0.5)

    # --- pack into kernel slabs (done once, at init) ---
    embT = jnp.zeros((E, VPAD), jnp.float32).at[:, :VOCAB].set(embed.T)

    slabN = jnp.zeros((R_N, 2 * F), jnp.float32)
    slabN = slabN.at[OFF_ATTN:OFF_ATTN + ATTN_D, 0:F].set(attn_w[0])
    slabN = slabN.at[OFF_ATTN + ATTN_D:OFF_ATTN + 2 * ATTN_D, F:2 * F].set(attn_w[1])
    slabN = slabN.at[OFF_W1T:OFF_W1T + FFN, :].set(w1)
    slabN = slabN.at[OFF_W2T:OFF_W2T + FFN, 0:C].set(w2.T)
    slabN = slabN.at[OFF_B1:OFF_B1 + FFN, 0].set(b1)
    slabN = slabN.at[OFF_B2, 0:C].set(b2)

    slabW = jnp.zeros((R_W, 2 * ATTN_D), jnp.float32)
    slabW = slabW.at[0:C, 0:ATTN_D].set(attn_u[0])
    slabW = slabW.at[C:2 * C, ATTN_D:2 * ATTN_D].set(attn_u[1])
    # fused conv weight: distinct shift d (0..4) <-> branch0 tap d-1 (1<=d<=3), branch1 tap d
    for d in range(NSHIFT):
        if 1 <= d <= 3:
            slabW = slabW.at[OFF_CONV:OFF_CONV + F, d * E:(d + 1) * E].set(conv_w[0][:, :, d - 1])
        slabW = slabW.at[OFF_CONV + F:OFF_CONV + 2 * F, d * E:(d + 1) * E].set(conv_w[1][:, :, d])
    slabW = slabW.at[OFF_CONV:OFF_CONV + F, NSHIFT * E].set(conv_b[0])          # bias column
    slabW = slabW.at[OFF_CONV + F:OFF_CONV + 2 * F, NSHIFT * E].set(conv_b[1])

    return {"embT": embT,
            "slabN": slabN.astype(jnp.bfloat16),
            "slabW": slabW.astype(jnp.bfloat16)}


if __name__ == "__main__":
    key = jax.random.PRNGKey(0)
    pkey, xkey, tkey = jax.random.split(key, 3)
    params = init_params(pkey)

    x_ids = jax.random.randint(xkey, (B, L), 1, VOCAB)              # token ids (avoid padding_idx=0)
    target = jax.random.bernoulli(tkey, 0.3, (B, C)).astype(jnp.float32)

    fwd = jax.jit(multicnn_forward)
    y_hat, loss = fwd(params, x_ids, target)
    jax.block_until_ready((y_hat, loss))

    assert y_hat.shape == (B, C) and y_hat.dtype == jnp.float32
    assert loss.shape == () and bool(jnp.isfinite(loss))
    print("KERNEL_OK")
</pallas_src>

<mosaic_0001>
module attributes {stable_mosaic.version = 11 : i64} {
  func.func @_multicnn_kernel(%arg0: i32, %arg1: memref<1x44xi32, #tpu.memory_space<vmem>>, %arg2: memref<2x8xf32, #tpu.memory_space<vmem>>, %arg3: memref<32x64xf32, #tpu.memory_space<vmem>>, %arg4: memref<912x64xbf16, #tpu.memory_space<vmem>>, %arg5: memref<80x512xbf16, #tpu.memory_space<vmem>>, %arg6: memref<2x8xf32, #tpu.memory_space<vmem>>, %arg7: memref<1x1xf32, #tpu.memory_space<vmem>>) attributes {dimension_semantics = [#tpu.dimension_semantics<arbitrary>], iteration_bounds = array<i64: 1>, scalar_prefetch = 0 : i64, scratch_operands = 0 : i64, tpu.core_type = #tpu.core_type<tc>, window_params = [{pipeline_mode = #tpu.pipeline_mode<synchronous>, transform_indices = @transform_0, window_bounds = array<i64: 1, 44>}, {pipeline_mode = #tpu.pipeline_mode<synchronous>, transform_indices = @transform_1, window_bounds = array<i64: 2, 8>}, {pipeline_mode = #tpu.pipeline_mode<synchronous>, transform_indices = @transform_2, window_bounds = array<i64: 32, 64>}, {pipeline_mode = #tpu.pipeline_mode<synchronous>, transform_indices = @transform_3, window_bounds = array<i64: 912, 64>}, {pipeline_mode = #tpu.pipeline_mode<synchronous>, transform_indices = @transform_4, window_bounds = array<i64: 80, 512>}, {pipeline_mode = #tpu.pipeline_mode<synchronous>, transform_indices = @transform_5, window_bounds = array<i64: 2, 8>}, {pipeline_mode = #tpu.pipeline_mode<synchronous>, transform_indices = @transform_6, window_bounds = array<i64: 1, 1>}]} {
    %c0 = arith.constant 0 : index
    %c0_0 = arith.constant 0 : index
    %0 = vector.load %arg1[%c0, %c0_0] : memref<1x44xi32, #tpu.memory_space<vmem>>, vector<1x44xi32>
    %1 = tpu.iota {dimensions = array<i32: 0>} : vector<64x44xi32>
    %2 = vector.broadcast %0 : vector<1x44xi32> to vector<64x44xi32>
    %3 = arith.cmpi eq, %1, %2 : vector<64x44xi32>
    %4 = arith.extui %3 : vector<64x44xi1> to vector<64x44xi32>
    %5 = arith.sitofp %4 : vector<64x44xi32> to vector<64x44xf32>
    %c0_1 = arith.constant 0 : index
    %c0_2 = arith.constant 0 : index
    %6 = vector.load %arg3[%c0_1, %c0_2] : memref<32x64xf32, #tpu.memory_space<vmem>>, vector<32x64xf32>
    %cst = arith.constant dense<0.000000e+00> : vector<32x44xf32>
    %7 = tpu.matmul %6, %5, %cst {dimension_numbers = #tpu.dot_dimension_numbers<[1], [0], [0], [1], [0, 0, 1, 1], [], []>} : vector<32x64xf32>, vector<64x44xf32>, vector<32x44xf32> -> vector<32x44xf32>
    %8 = arith.truncf %7 : vector<32x44xf32> to vector<32x44xbf16>
    %9 = vector.extract_strided_slice %8 {offsets = [0, 0], sizes = [32, 40], strides = [1, 1]} : vector<32x44xbf16> to vector<32x40xbf16>
    %10 = vector.extract_strided_slice %8 {offsets = [0, 1], sizes = [32, 40], strides = [1, 1]} : vector<32x44xbf16> to vector<32x40xbf16>
    %11 = vector.extract_strided_slice %8 {offsets = [0, 2], sizes = [32, 40], strides = [1, 1]} : vector<32x44xbf16> to vector<32x40xbf16>
    %12 = vector.extract_strided_slice %8 {offsets = [0, 3], sizes = [32, 40], strides = [1, 1]} : vector<32x44xbf16> to vector<32x40xbf16>
    %13 = vector.extract_strided_slice %8 {offsets = [0, 4], sizes = [32, 40], strides = [1, 1]} : vector<32x44xbf16> to vector<32x40xbf16>
    %cst_3 = arith.constant 1.000000e+00 : bf16
    %14 = vector.broadcast %cst_3 : bf16 to vector<8x40xbf16>
    %cst_4 = arith.constant 0.000000e+00 : bf16
    %15 = vector.broadcast %cst_4 : bf16 to vector<88x40xbf16>
    %16 = tpu.concatenate %9, %10, %11, %12, %13, %14, %15 in 0 : vector<32x40xbf16>, vector<32x40xbf16>, vector<32x40xbf16>, vector<32x40xbf16>, vector<32x40xbf16>, vector<8x40xbf16>, vector<88x40xbf16> -> vector<256x40xbf16>
    %c16 = arith.constant 16 : index
    %c0_5 = arith.constant 0 : index
    %17 = vector.load %arg5[%c16, %c0_5] : memref<80x512xbf16, #tpu.memory_space<vmem>>, vector<64x256xbf16>
    %cst_6 = arith.constant dense<0.000000e+00> : vector<64x40xf32>
    %18 = tpu.matmul %17, %16, %cst_6 {dimension_numbers = #tpu.dot_dimension_numbers<[1], [0], [0], [1], [0, 0, 1, 1], [], []>} : vector<64x256xbf16>, vector<256x40xbf16>, vector<64x40xf32> -> vector<64x40xf32>
    %19 = math.tanh %18 : vector<64x40xf32>
    %20 = arith.truncf %19 : vector<64x40xf32> to vector<64x40xbf16>
    %c0_7 = arith.constant 0 : index
    %c0_8 = arith.constant 0 : index
    %21 = vector.load %arg4[%c0_7, %c0_8] : memref<912x64xbf16, #tpu.memory_space<vmem>>, vector<512x64xbf16>
    %cst_9 = arith.constant dense<0.000000e+00> : vector<512x40xf32>
    %22 = tpu.matmul %21, %20, %cst_9 {dimension_numbers = #tpu.dot_dimension_numbers<[1], [0], [0], [1], [0, 0, 1, 1], [], []>} : vector<512x64xbf16>, vector<64x40xbf16>, vector<512x40xf32> -> vector<512x40xf32>
    %23 = math.tanh %22 : vector<512x40xf32>
    %c0_10 = arith.constant 0 : index
    %c0_11 = arith.constant 0 : index
    %24 = vector.load %arg5[%c0_10, %c0_11] : memref<80x512xbf16, #tpu.memory_space<vmem>>, vector<16x512xbf16>
    %25 = arith.truncf %23 : vector<512x40xf32> to vector<512x40xbf16>
    %cst_12 = arith.constant dense<0.000000e+00> : vector<16x40xf32>
    %26 = tpu.matmul %24, %25, %cst_12 {dimension_numbers = #tpu.dot_dimension_numbers<[1], [0], [0], [1], [0, 0, 1, 1], [], []>} : vector<16x512xbf16>, vector<512x40xbf16>, vector<16x40xf32> -> vector<16x40xf32>
    %c512 = arith.constant 512 : index
    %c0_13 = arith.constant 0 : index
    %27 = vector.load %arg4[%c512, %c0_13] : memref<912x64xbf16, #tpu.memory_space<vmem>>, vector<128x64xbf16>
    %c640 = arith.constant 640 : index
    %c0_14 = arith.constant 0 : index
    %28 = vector.load %arg4[%c640, %c0_14] : memref<912x64xbf16, #tpu.memory_space<vmem>>, vector<128x8xbf16>
    %29 = arith.extf %28 : vector<128x8xbf16> to vector<128x8xf32>
    %c768 = arith.constant 768 : index
    %c0_15 = arith.constant 0 : index
    %30 = vector.load %arg4[%c768, %c0_15] : memref<912x64xbf16, #tpu.memory_space<vmem>>, vector<128x1xbf16>
    %31 = arith.extf %30 : vector<128x1xbf16> to vector<128x1xf32>
    %c896 = arith.constant 896 : index
    %c0_16 = arith.constant 0 : index
    %32 = vector.load %arg4[%c896, %c0_16] : memref<912x64xbf16, #tpu.memory_space<vmem>>, vector<1x8xbf16>
    %33 = arith.extf %32 : vector<1x8xbf16> to vector<1x8xf32>
    %34 = tpu.iota {dimensions = array<i32: 0>} : vector<64x8xi32>
    %c32_i32 = arith.constant 32 : i32
    %35 = vector.broadcast %c32_i32 : i32 to vector<64x8xi32>
    %36 = arith.cmpi slt, %34, %35 : vector<64x8xi32>
    %37 = vector.extract_strided_slice %26 {offsets = [0, 2], sizes = [16, 16], strides = [1, 1]} : vector<16x40xf32> to vector<16x16xf32>
    %cst_17 = arith.constant dense<0xFF800000> : vector<16xf32>
    %38 = vector.multi_reduction <maximumf>, %37, %cst_17 [1] : vector<16x16xf32> to vector<16xf32>
    %39 = vector.shape_cast %38 : vector<16xf32> to vector<16x1xf32>
    %40 = vector.broadcast %39 : vector<16x1xf32> to vector<16x16xf32>
    %41 = arith.subf %37, %40 : vector<16x16xf32>
    %42 = math.exp %41 : vector<16x16xf32>
    %cst_18 = arith.constant dense<0.000000e+00> : vector<16xf32>
    %43 = vector.multi_reduction <add>, %42, %cst_18 [1] : vector<16x16xf32> to vector<16xf32>
    %44 = vector.shape_cast %43 : vector<16xf32> to vector<16x1xf32>
    %45 = vector.broadcast %44 : vector<16x1xf32> to vector<16x16xf32>
    %46 = arith.divf %42, %45 : vector<16x16xf32>
    %47 = vector.extract_strided_slice %20 {offsets = [0, 2], sizes = [64, 16], strides = [1, 1]} : vector<64x40xbf16> to vector<64x16xbf16>
    %48 = arith.truncf %46 : vector<16x16xf32> to vector<16x16xbf16>
    %cst_19 = arith.constant dense<0.000000e+00> : vector<64x16xf32>
    %49 = tpu.matmul %47, %48, %cst_19 {dimension_numbers = #tpu.dot_dimension_numbers<[1], [1], [0], [0], [0, 0, 1, 0], [], []>} : vector<64x16xbf16>, vector<16x16xbf16>, vector<64x16xf32> -> vector<64x16xf32>
    %50 = vector.extract_strided_slice %49 {offsets = [0, 0], sizes = [64, 8], strides = [1, 1]} : vector<64x16xf32> to vector<64x8xf32>
    %51 = vector.extract_strided_slice %49 {offsets = [0, 8], sizes = [64, 8], strides = [1, 1]} : vector<64x16xf32> to vector<64x8xf32>
    %52 = arith.select %36, %50, %51 : vector<64x8xi1>, vector<64x8xf32>
    %53 = arith.truncf %52 : vector<64x8xf32> to vector<64x8xbf16>
    %cst_20 = arith.constant dense<0.000000e+00> : vector<128x8xf32>
    %54 = tpu.matmul %27, %53, %cst_20 {dimension_numbers = #tpu.dot_dimension_numbers<[1], [0], [0], [1], [0, 0, 1, 1], [], []>} : vector<128x64xbf16>, vector<64x8xbf16>, vector<128x8xf32> -> vector<128x8xf32>
    %55 = vector.broadcast %31 : vector<128x1xf32> to vector<128x8xf32>
    %56 = arith.addf %54, %55 : vector<128x8xf32>
    %cst_21 = arith.constant 0.000000e+00 : f32
    %57 = vector.broadcast %cst_21 : f32 to vector<128x8xf32>
    %58 = arith.maximumf %56, %57 : vector<128x8xf32>
    %59 = arith.mulf %29, %58 : vector<128x8xf32>
    %cst_22 = arith.constant dense<0.000000e+00> : vector<8xf32>
    %60 = vector.multi_reduction <add>, %59, %cst_22 [0] : vector<128x8xf32> to vector<8xf32>
    %61 = vector.shape_cast %60 : vector<8xf32> to vector<1x8xf32>
    %62 = arith.addf %61, %33 : vector<1x8xf32>
    %63 = vector.extract_strided_slice %26 {offsets = [0, 22], sizes = [16, 16], strides = [1, 1]} : vector<16x40xf32> to vector<16x16xf32>
    %cst_23 = arith.constant dense<0xFF800000> : vector<16xf32>
    %64 = vector.multi_reduction <maximumf>, %63, %cst_23 [1] : vector<16x16xf32> to vector<16xf32>
    %65 = vector.shape_cast %64 : vector<16xf32> to vector<16x1xf32>
    %66 = vector.broadcast %65 : vector<16x1xf32> to vector<16x16xf32>
    %67 = arith.subf %63, %66 : vector<16x16xf32>
    %68 = math.exp %67 : vector<16x16xf32>
    %cst_24 = arith.constant dense<0.000000e+00> : vector<16xf32>
    %69 = vector.multi_reduction <add>, %68, %cst_24 [1] : vector<16x16xf32> to vector<16xf32>
    %70 = vector.shape_cast %69 : vector<16xf32> to vector<16x1xf32>
    %71 = vector.broadcast %70 : vector<16x1xf32> to vector<16x16xf32>
    %72 = arith.divf %68, %71 : vector<16x16xf32>
    %73 = vector.extract_strided_slice %20 {offsets = [0, 22], sizes = [64, 16], strides = [1, 1]} : vector<64x40xbf16> to vector<64x16xbf16>
    %74 = arith.truncf %72 : vector<16x16xf32> to vector<16x16xbf16>
    %cst_25 = arith.constant dense<0.000000e+00> : vector<64x16xf32>
    %75 = tpu.matmul %73, %74, %cst_25 {dimension_numbers = #tpu.dot_dimension_numbers<[1], [1], [0], [0], [0, 0, 1, 0], [], []>} : vector<64x16xbf16>, vector<16x16xbf16>, vector<64x16xf32> -> vector<64x16xf32>
    %76 = vector.extract_strided_slice %75 {offsets = [0, 0], sizes = [64, 8], strides = [1, 1]} : vector<64x16xf32> to vector<64x8xf32>
    %77 = vector.extract_strided_slice %75 {offsets = [0, 8], sizes = [64, 8], strides = [1, 1]} : vector<64x16xf32> to vector<64x8xf32>
    %78 = arith.select %36, %76, %77 : vector<64x8xi1>, vector<64x8xf32>
    %79 = arith.truncf %78 : vector<64x8xf32> to vector<64x8xbf16>
    %cst_26 = arith.constant dense<0.000000e+00> : vector<128x8xf32>
    %80 = tpu.matmul %27, %79, %cst_26 {dimension_numbers = #tpu.dot_dimension_numbers<[1], [0], [0], [1], [0, 0, 1, 1], [], []>} : vector<128x64xbf16>, vector<64x8xbf16>, vector<128x8xf32> -> vector<128x8xf32>
    %81 = vector.broadcast %31 : vector<128x1xf32> to vector<128x8xf32>
    %82 = arith.addf %80, %81 : vector<128x8xf32>
    %cst_27 = arith.constant 0.000000e+00 : f32
    %83 = vector.broadcast %cst_27 : f32 to vector<128x8xf32>
    %84 = arith.maximumf %82, %83 : vector<128x8xf32>
    %85 = arith.mulf %29, %84 : vector<128x8xf32>
    %cst_28 = arith.constant dense<0.000000e+00> : vector<8xf32>
    %86 = vector.multi_reduction <add>, %85, %cst_28 [0] : vector<128x8xf32> to vector<8xf32>
    %87 = vector.shape_cast %86 : vector<8xf32> to vector<1x8xf32>
    %88 = arith.addf %87, %33 : vector<1x8xf32>
    %89 = tpu.concatenate %62, %88 in 0 : vector<1x8xf32>, vector<1x8xf32> -> vector<2x8xf32>
    %c0_29 = arith.constant 0 : index
    %c0_30 = arith.constant 0 : index
    %90 = vector.load %arg6[%c0_29, %c0_30] : memref<2x8xf32, #tpu.memory_space<vmem>>, vector<2x8xf32>
    tpu.vector_store %arg6[%c0_29, %c0_30], %89 {strides = array<i32>} : memref<2x8xf32, #tpu.memory_space<vmem>>, vector<2x8xf32>,
    %c0_31 = arith.constant 0 : index
    %c0_32 = arith.constant 0 : index
    %91 = vector.load %arg2[%c0_31, %c0_32] : memref<2x8xf32, #tpu.memory_space<vmem>>, vector<2x8xf32>
    %cst_33 = arith.constant 0.000000e+00 : f32
    %92 = vector.broadcast %cst_33 : f32 to vector<2x8xf32>
    %93 = arith.maximumf %89, %92 : vector<2x8xf32>
    %94 = arith.mulf %89, %91 : vector<2x8xf32>
    %95 = arith.subf %93, %94 : vector<2x8xf32>
    %96 = math.absf %89 : vector<2x8xf32>
    %cst_34 = arith.constant 0.000000e+00 : f32
    %97 = vector.broadcast %cst_34 : f32 to vector<2x8xf32>
    %98 = arith.subf %97, %96 : vector<2x8xf32>
    %99 = math.exp %98 : vector<2x8xf32>
    %cst_35 = arith.constant 1.000000e+00 : f32
    %100 = vector.broadcast %cst_35 : f32 to vector<2x8xf32>
    %101 = arith.addf %100, %99 : vector<2x8xf32>
    %102 = math.log %101 : vector<2x8xf32>
    %103 = arith.addf %95, %102 : vector<2x8xf32>
    %cst_36 = arith.constant dense<0.000000e+00> : vector<2xf32>
    %104 = vector.multi_reduction <add>, %103, %cst_36 [1] : vector<2x8xf32> to vector<2xf32>
    %105 = vector.shape_cast %104 : vector<2xf32> to vector<2x1xf32>
    %cst_37 = arith.constant dense<0.000000e+00> : vector<1xf32>
    %106 = vector.multi_reduction <add>, %105, %cst_37 [0] : vector<2x1xf32> to vector<1xf32>
    %107 = vector.shape_cast %106 : vector<1xf32> to vector<1x1xf32>
    %cst_38 = arith.constant 6.250000e-02 : f32
    %108 = vector.broadcast %cst_38 : f32 to vector<1x1xf32>
    %109 = arith.mulf %107, %108 : vector<1x1xf32>
    %c0_39 = arith.constant 0 : index
    %c0_40 = arith.constant 0 : index
    %110 = vector.load %arg7[%c0_39, %c0_40] : memref<1x1xf32, #tpu.memory_space<vmem>>, vector<1x1xf32>
    tpu.vector_store %arg7[%c0_39, %c0_40], %109 {strides = array<i32>} : memref<1x1xf32, #tpu.memory_space<vmem>>, vector<1x1xf32>,
    return
  }
  func.func @transform_0(%arg0: i32) -> (i32, i32) {
    %c0_i32 = arith.constant 0 : i32
    %c0_i32_0 = arith.constant 0 : i32
    %c0_i32_1 = arith.constant 0 : i32
    return %c0_i32, %c0_i32_0 : i32, i32
  }
  func.func @transform_1(%arg0: i32) -> (i32, i32) {
    %c0_i32 = arith.constant 0 : i32
    %c0_i32_0 = arith.constant 0 : i32
    %c0_i32_1 = arith.constant 0 : i32
    return %c0_i32, %c0_i32_0 : i32, i32
  }
  func.func @transform_2(%arg0: i32) -> (i32, i32) {
    %c0_i32 = arith.constant 0 : i32
    %c0_i32_0 = arith.constant 0 : i32
    %c0_i32_1 = arith.constant 0 : i32
    return %c0_i32, %c0_i32_0 : i32, i32
  }
  func.func @transform_3(%arg0: i32) -> (i32, i32) {
    %c0_i32 = arith.constant 0 : i32
    %c0_i32_0 = arith.constant 0 : i32
    %c0_i32_1 = arith.constant 0 : i32
    return %c0_i32, %c0_i32_0 : i32, i32
  }
  func.func @transform_4(%arg0: i32) -> (i32, i32) {
    %c0_i32 = arith.constant 0 : i32
    %c0_i32_0 = arith.constant 0 : i32
    %c0_i32_1 = arith.constant 0 : i32
    return %c0_i32, %c0_i32_0 : i32, i32
  }
  func.func @transform_5(%arg0: i32) -> (i32, i32) {
    %c0_i32 = arith.constant 0 : i32
    %c0_i32_0 = arith.constant 0 : i32
    %c0_i32_1 = arith.constant 0 : i32
    return %c0_i32, %c0_i32_0 : i32, i32
  }
  func.func @transform_6(%arg0: i32) -> (i32, i32) {
    %c0_i32 = arith.constant 0 : i32
    %c0_i32_0 = arith.constant 0 : i32
    %c0_i32_1 = arith.constant 0 : i32
    return %c0_i32, %c0_i32_0 : i32, i32
  }
}

</mosaic_0001>

<llo_original>
// kernel: multicnn_forward.1
$region0: #{multicnn_forward.1}
  #allocation0 [shape = 'u32[]', space=smem, size = 0x4, offset = 0x4, fixed_abs, tag = 'smem constant byte address 0x4 - core index']
  #allocation1 [shape = 'u32[144,128]{1,0:T(1,128)}', space=vmem, size = 0x12000, scoped, tag = 'internal scratch']
  %s0 = inlined_call_operand.vmem [shape: s32[1,44], index: 0, kind: input, shape index: {}]
  %s1 = inlined_call_operand.vmem [shape: f32[2,8], index: 1, kind: input, shape index: {}]
  %s2 = inlined_call_operand.vmem [shape: f32[32,64], index: 2, kind: input, shape index: {}]
  %s3 = inlined_call_operand.vmem [shape: bf16[912,64], index: 3, kind: input, shape index: {}]
  %s4 = inlined_call_operand.vmem [shape: bf16[80,512], index: 4, kind: input, shape index: {}]
  %s5 = inlined_call_operand.hbm [shape: f32[2,8], index: 5, kind: output, shape index: {0}]
  %s6 = inlined_call_operand.hbm [shape: f32[1,1], index: 6, kind: output, shape index: {1}]
  %7 = xla_tuple %s5, %s6
  %s8 = sld [smem:[#allocation0]]
  $region38: #{multicnn_forward.1} parent=0
    _
  %s10 = ssub.s32 1, %s8
  %s11 = scalar_select 0, %s10, %s8
  $region1: #{multicnn_forward.1} parent=0
    #allocation2 [shape = 'u8[1024]{0}', space=vmem, size = 0x400, scoped, tag = 'output window, operand 0, single buffered']
    #allocation3 [shape = 's32[1]{0}', space=sflag, size = 0x4, scoped, tag = 'scoped memory for multicnn_forward.1']
    #allocation4 [shape = 'u8[512]{0}', space=vmem, size = 0x400, scoped, tag = 'output window, operand 1, single buffered']
    #allocation5 [shape = 's32[1]{0}', space=sflag, size = 0x4, scoped, tag = 'scoped memory for multicnn_forward.1']
    %12 = vsyncpa [#allocation3], 0
    %13 = vsyncpa [#allocation5], 0
    // Predicated region
    $region2: #{multicnn_forward.1} parent=1 // pred_check
      _
    $region3: #{multicnn_forward.1} parent=1 // pred_check_branch
      %15 = sbr.rel (0) target = $region5
    $region4: #{multicnn_forward.1} parent=1 // pred_region
      _
    $region5: #{multicnn_forward.1} parent=1 // pred_fallthru
      _
    // Predicated region
    $region6: #{multicnn_forward.1} parent=1 // pred_check
      _
    $region7: #{multicnn_forward.1} parent=1 // pred_check_branch
      %17 = sbr.rel (0) target = $region9
    $region8: #{multicnn_forward.1} parent=1 // pred_region
      _
    $region9: #{multicnn_forward.1} parent=1 // pred_fallthru
      _
    // Predicated region
    $region10: #{multicnn_forward.1} parent=1 // pred_check
      _
    $region11: #{multicnn_forward.1} parent=1 // pred_check_branch
      %19 = sbr.rel (0) target = $region13
    $region12: #{multicnn_forward.1} parent=1 // pred_region
      _
    $region13: #{multicnn_forward.1} parent=1 // pred_fallthru
      _
    // Predicated region
    $region14: #{multicnn_forward.1} parent=1 // pred_check
      _
    $region15: #{multicnn_forward.1} parent=1 // pred_check_branch
      %21 = sbr.rel (0) target = $region17
    $region16: #{multicnn_forward.1} parent=1 // pred_region
      _
    $region17: #{multicnn_forward.1} parent=1 // pred_fallthru
      _
    // Predicated region
    $region18: #{multicnn_forward.1} parent=1 // pred_check
      _
    $region19: #{multicnn_forward.1} parent=1 // pred_check_branch
      %23 = sbr.rel (0) target = $region21
    $region20: #{multicnn_forward.1} parent=1 // pred_region
      _
    $region21: #{multicnn_forward.1} parent=1 // pred_fallthru
      _
    %v26 = vld [vmem:[%s0] sm:$0x1]
    %v27 = vlaneseq
    %v28 = vshrl.u32 %v27, 7
    %v29 = vadd.s32 %v28, 8
    %v30 = vadd.s32 %v28, 16
    %v31 = vadd.s32 %v28, 24
    %v32 = vadd.s32 %v28, 32
    %v33 = vadd.s32 %v28, 40
    %v34 = vadd.s32 %v28, 48
    %v35 = vadd.s32 %v28, 56
    %v36 = vlaneseq
    %v37 = vshrl.u32 %v36, 7
    %v38 = vsub.s32 0, %v37
    %v39 = vrot.slane %v26, %v38
    %vm40 = vcmp.eq.s32.totalorder %v28, %v39
    %vm41 = vcmp.eq.s32.totalorder %v29, %v39
    %vm42 = vcmp.eq.s32.totalorder %v30, %v39
    %vm43 = vcmp.eq.s32.totalorder %v31, %v39
    %vm44 = vcmp.eq.s32.totalorder %v32, %v39
    %vm45 = vcmp.eq.s32.totalorder %v33, %v39
    %vm46 = vcmp.eq.s32.totalorder %v34, %v39
    %vm47 = vcmp.eq.s32.totalorder %v35, %v39
    %v48 = vsel %vm40, 1, 0
    %v49 = vsel %vm41, 1, 0
    %v50 = vsel %vm42, 1, 0
    %v51 = vsel %vm43, 1, 0
    %v52 = vsel %vm44, 1, 0
    %v53 = vsel %vm45, 1, 0
    %v54 = vsel %vm46, 1, 0
    %v55 = vsel %vm47, 1, 0
    %v56 = vcvt.s32.f32 %v48
    %v57 = vcvt.s32.f32 %v49
    %v58 = vcvt.s32.f32 %v50
    %v59 = vcvt.s32.f32 %v51
    %v60 = vcvt.s32.f32 %v52
    %v61 = vcvt.s32.f32 %v53
    %v62 = vcvt.s32.f32 %v54
    %v63 = vcvt.s32.f32 %v55
    %v64 = vld [vmem:[%s2] sm:$0xff]
    %v65 = vld [vmem:[%s2 + $0x8] sm:$0xff]
    %v66 = vld [vmem:[%s2 + $0x10] sm:$0xff]
    %v67 = vld [vmem:[%s2 + $0x18] sm:$0xff]
    %vm68 = vcmask 523264
    %v70 = vsel %vm68, %v64, 0
    %v73 = vsel %vm68, %v65, 0
    %v76 = vsel %vm68, %v66, 0
    %v79 = vsel %vm68, %v67, 0
    %81 = vmatprep.subr.mxu0 0.0
    %82 = vmatpush1.msra.mxu0 %v56
    %83 = vmatprep.subr.mxu0 0.0
    %84 = vmatpush1.msra.mxu0 %v57
    %85 = vmatprep.subr.mxu0 0.0
    %86 = vmatpush1.msra.mxu0 %v58
    %87 = vmatprep.subr.mxu0 0.0
    %88 = vmatpush1.msra.mxu0 %v59
    %89 = vmatprep.subr.mxu0 0.0
    %90 = vmatpush1.msra.mxu0 %v60
    %91 = vmatprep.subr.mxu0 0.0
    %92 = vmatpush1.msra.mxu0 %v61
    %93 = vmatprep.subr.mxu0 0.0
    %94 = vmatpush1.msra.mxu0 %v62
    %95 = vmatprep.subr.mxu0 0.0
    %96 = vmatpush1.msra.mxu0 %v63
    %97 = vmatprep.subr.mxu0 0.0
    %98 = vmatpush1.msra.mxu0 0.0
    %99 = vmatprep.subr.mxu0 0.0
    %100 = vmatpush1.msra.mxu0 0.0
    %101 = vmatprep.subr.mxu0 0.0
    %102 = vmatpush1.msra.mxu0 0.0
    %103 = vmatprep.subr.mxu0 0.0
    %104 = vmatpush1.msra.mxu0 0.0
    %105 = vmatprep.subr.mxu0 0.0
    %106 = vmatpush1.msra.mxu0 0.0
    %107 = vmatprep.subr.mxu0 0.0
    %108 = vmatpush1.msra.mxu0 0.0
    %109 = vmatprep.subr.mxu0 0.0
    %110 = vmatpush1.msra.mxu0 0.0
    %111 = vmatprep.subr.mxu0 0.0
    %112 = vmatpush1.msra.mxu0 0.0
    %113 = vmatprep.subr.mxu0 0.0
    %114 = vmatpush1.msra.mxu0 0.0
    %115 = vmatprep.subr.mxu0 0.0
    %116 = vmatpush1.msra.mxu0 0.0
    %117 = vmatprep.subr.mxu0 0.0
    %118 = vmatpush1.msra.mxu0 0.0
    %119 = vmatprep.subr.mxu0 0.0
    %120 = vmatpush1.msra.mxu0 0.0
    %121 = vmatprep.subr.mxu0 0.0
    %122 = vmatpush1.msra.mxu0 0.0
    %123 = vmatprep.subr.mxu0 0.0
    %124 = vmatpush1.msra.mxu0 0.0
    %125 = vmatprep.subr.mxu0 0.0
    %126 = vmatpush1.msra.mxu0 0.0
    %127 = vmatprep.subr.mxu0 0.0
    %128 = vmatpush1.msra.mxu0 0.0
    %129 = vmatprep.subr.mxu0 0.0
    %130 = vmatpush1.msra.mxu0 0.0
    %131 = vmatprep.subr.mxu0 0.0
    %132 = vmatpush1.msra.mxu0 0.0
    %133 = vmatprep.subr.mxu0 0.0
    %134 = vmatpush1.msra.mxu0 0.0
    %135 = vmatprep.subr.mxu0 0.0
    %136 = vmatpush1.msra.mxu0 0.0
    %137 = vmatprep.subr.mxu0 0.0
    %138 = vmatpush1.msra.mxu0 0.0
    %139 = vmatprep.subr.mxu0 0.0
    %140 = vmatpush1.msra.mxu0 0.0
    %141 = vmatprep.subr.mxu0 0.0
    %142 = vmatpush1.msra.mxu0 0.0
    %143 = vmatprep.subr.mxu0 0.0
    %144 = vmatpush1.msra.mxu0 0.0
    %145 = vmatprep.mubr.f32.mxu0 0.0
    %146 = vmatmul.mubr.f32.gmra.mrb[0].mxu0 %v70
    %v147 = vpop.f32.mrb[0].mxu0
    %v148 = vadd.f32 0.0, %v147
    %v149 = vpop.f32.mrb[0].mxu0
    %150 = vmatprep.mubr.f32.mxu0 0.0
    %151 = vmatmul.mubr.f32.gmra.mrb[0].mxu0 %v73
    %v152 = vpop.f32.mrb[0].mxu0
    %v153 = vadd.f32 0.0, %v152
    %v154 = vpop.f32.mrb[0].mxu0
    %155 = vmatprep.mubr.f32.mxu0 0.0
    %156 = vmatmul.mubr.f32.gmra.mrb[0].mxu0 %v76
    %v157 = vpop.f32.mrb[0].mxu0
    %v158 = vadd.f32 0.0, %v157
    %v159 = vpop.f32.mrb[0].mxu0
    %160 = vmatprep.mubr.f32.mxu0 0.0
    %161 = vmatmul.mubr.f32.gmra.mrb[0].mxu0 %v79
    %v162 = vpop.f32.mrb[0].mxu0
    %v163 = vadd.f32 0.0, %v162
    %v164 = vpop.f32.mrb[0].mxu0
    %165 = vdwg.mxu0
    %v166 = vpack.c.bf16 %v153, %v148
    %v167 = vpack.c.bf16 %v163, %v158
    %170 = vrot.lane.b32.xlu0 %v166, 127
    %v171 = vpop.permute.xlu0 %170
    %172 = vrot.lane.b32.xlu0 %v167, 127
    %v173 = vpop.permute.xlu0 %172
    %176 = vrot.lane.b32.xlu0 %v166, 126
    %v177 = vpop.permute.xlu0 %176
    %178 = vrot.lane.b32.xlu0 %v167, 126
    %v179 = vpop.permute.xlu0 %178
    %182 = vrot.lane.b32.xlu0 %v166, 125
    %v183 = vpop.permute.xlu0 %182
    %184 = vrot.lane.b32.xlu0 %v167, 125
    %v185 = vpop.permute.xlu0 %184
    %188 = vrot.lane.b32.xlu0 %v166, 124
    %v189 = vpop.permute.xlu0 %188
    %190 = vrot.lane.b32.xlu0 %v167, 124
    %v191 = vpop.permute.xlu0 %190
    %vm194 = vcmask 1043456
    %v197 = vsel %vm194, 1065369472, 0
    %v199 = vld [vmem:[%s4 + $0x20] sm:$0xff]
    %v200 = vld [vmem:[%s4 + $0x30] sm:$0xff]
    %v201 = vld [vmem:[%s4 + $0x40] sm:$0xff]
    %v202 = vld [vmem:[%s4 + $0x50] sm:$0xff]
    %v203 = vld [vmem:[%s4 + $0x60] sm:$0xff]
    %v204 = vld [vmem:[%s4 + $0x70] sm:$0xff]
    %v205 = vld [vmem:[%s4 + $0x80] sm:$0xff]
    %v206 = vld [vmem:[%s4 + $0x90] sm:$0xff]
    %v215 = vunpack.c.l.b16 %v199
    %v216 = vunpack.c.h.b16 %v199
    %v217 = vunpack.c.l.b16 %v200
    %v218 = vunpack.c.h.b16 %v200
    %v219 = vunpack.c.l.b16 %v201
    %v220 = vunpack.c.h.b16 %v201
    %v221 = vunpack.c.l.b16 %v202
    %v222 = vunpack.c.h.b16 %v202
    %v223 = vunpack.c.l.b16 %v203
    %v224 = vunpack.c.h.b16 %v203
    %v225 = vunpack.c.l.b16 %v204
    %v226 = vunpack.c.h.b16 %v204
    %v227 = vunpack.c.l.b16 %v205
    %v228 = vunpack.c.h.b16 %v205
    %v229 = vunpack.c.l.b16 %v206
    %v230 = vunpack.c.h.b16 %v206
    %v231 = vpack.c.b16 %v217, %v215
    %v232 = vpack.c.b16 %v218, %v216
    %v233 = vpack.c.b16 %v221, %v219
    %v234 = vpack.c.b16 %v222, %v220
    %v235 = vpack.c.b16 %v225, %v223
    %v236 = vpack.c.b16 %v226, %v224
    %v237 = vpack.c.b16 %v229, %v227
    %v238 = vpack.c.b16 %v230, %v228
    %247 = vmatprep.subr.bf16.mxu0 0
    %248 = vmatpush1.bf16.msra.mxu0 %v166
    %249 = vmatprep.subr.bf16.mxu0 0
    %250 = vmatpush1.bf16.msra.mxu0 %v167
    %251 = vmatprep.subr.bf16.mxu0 0
    %252 = vmatpush1.bf16.msra.mxu0 %v171
    %253 = vmatprep.subr.bf16.mxu0 0
    %254 = vmatpush1.bf16.msra.mxu0 %v173
    %255 = vmatprep.subr.bf16.mxu0 0
    %256 = vmatpush1.bf16.msra.mxu0 %v177
    %257 = vmatprep.subr.bf16.mxu0 0
    %258 = vmatpush1.bf16.msra.mxu0 %v179
    %259 = vmatprep.subr.bf16.mxu0 0
    %260 = vmatpush1.bf16.msra.mxu0 %v183
    %261 = vmatprep.subr.bf16.mxu0 0
    %262 = vmatpush1.bf16.msra.mxu0 %v185
    %263 = vmatprep.subr.bf16.mxu0 0
    %264 = vmatpush1.bf16.msra.mxu0 %v189
    %265 = vmatprep.subr.bf16.mxu0 0
    %266 = vmatpush1.bf16.msra.mxu0 %v191
    %267 = vmatprep.subr.bf16.mxu0 0
    %268 = vmatpush1.bf16.msra.mxu0 %v197
    %269 = vmatprep.subr.bf16.mxu0 0
    %270 = vmatpush1.bf16.msra.mxu0 0
    %271 = vmatprep.subr.bf16.mxu0 0
    %272 = vmatpush1.bf16.msra.mxu0 0
    %273 = vmatprep.subr.bf16.mxu0 0
    %274 = vmatpush1.bf16.msra.mxu0 0
    %275 = vmatprep.subr.bf16.mxu0 0
    %276 = vmatpush1.bf16.msra.mxu0 0
    %277 = vmatprep.subr.bf16.mxu0 0
    %278 = vmatpush1.bf16.msra.mxu0 0
    %279 = vmatprep.mubr.bf16.mxu0 %v232
    %280 = vmatmul.mubr.bf16.gmra.mrb[0].mxu0 %v231
    %v281 = vpop.f32.mrb[0].mxu0
    %v282 = vadd.f32 0.0, %v281
    %v283 = vpop.f32.mrb[0].mxu0
    %v284 = vpop.f32.mrb[0].mxu0
    %v285 = vadd.f32 0.0, %v284
    %v286 = vpop.f32.mrb[0].mxu0
    %287 = vmatprep.mubr.bf16.mxu0 %v234
    %288 = vmatmul.mubr.bf16.gmra.mrb[0].mxu0 %v233
    %v289 = vpop.f32.mrb[0].mxu0
    %v290 = vadd.f32 0.0, %v289
    %v291 = vpop.f32.mrb[0].mxu0
    %v292 = vpop.f32.mrb[0].mxu0
    %v293 = vadd.f32 0.0, %v292
    %v294 = vpop.f32.mrb[0].mxu0
    %295 = vmatprep.mubr.bf16.mxu0 %v236
    %296 = vmatmul.mubr.bf16.gmra.mrb[0].mxu0 %v235
    %v297 = vpop.f32.mrb[0].mxu0
    %v298 = vadd.f32 0.0, %v297
    %v299 = vpop.f32.mrb[0].mxu0
    %v300 = vpop.f32.mrb[0].mxu0
    %v301 = vadd.f32 0.0, %v300
    %v302 = vpop.f32.mrb[0].mxu0
    %303 = vmatprep.mubr.bf16.mxu0 %v238
    %304 = vmatmul.mubr.bf16.gmra.mrb[0].mxu0 %v237
    %v305 = vpop.f32.mrb[0].mxu0
    %v306 = vadd.f32 0.0, %v305
    %v307 = vpop.f32.mrb[0].mxu0
    %v308 = vpop.f32.mrb[0].mxu0
    %v309 = vadd.f32 0.0, %v308
    %v310 = vpop.f32.mrb[0].mxu0
    %311 = vdwg.mxu0
    %v312 = vtanh.pop %v282
    %v313 = vtanh.pop %v285
    %v314 = vtanh.pop %v290
    %v315 = vtanh.pop %v293
    %v316 = vtanh.pop %v298
    %v317 = vtanh.pop %v301
    %v318 = vtanh.pop %v306
    %v319 = vtanh.pop %v309
    %v320 = vpack.c.bf16 %v313, %v312
    %v321 = vpack.c.bf16 %v315, %v314
    %v322 = vpack.c.bf16 %v317, %v316
    %v323 = vpack.c.bf16 %v319, %v318
    %v324 = vld [vmem:[%s3] sm:$0xf]
    %v325 = vld [vmem:[%s3 + $0x4] sm:$0xf]
    %v326 = vld [vmem:[%s3 + $0x8] sm:$0xf]
    %v327 = vld [vmem:[%s3 + $0xc] sm:$0xf]
    %v328 = vld [vmem:[%s3 + $0x10] sm:$0xf]
    %v329 = vld [vmem:[%s3 + $0x14] sm:$0xf]
    %v330 = vld [vmem:[%s3 + $0x18] sm:$0xf]
    %v331 = vld [vmem:[%s3 + $0x1c] sm:$0xf]
    %v332 = vld [vmem:[%s3 + $0x20] sm:$0xf]
    %v333 = vld [vmem:[%s3 + $0x24] sm:$0xf]
    %v334 = vld [vmem:[%s3 + $0x28] sm:$0xf]
    %v335 = vld [vmem:[%s3 + $0x2c] sm:$0xf]
    %v336 = vld [vmem:[%s3 + $0x30] sm:$0xf]
    %v337 = vld [vmem:[%s3 + $0x34] sm:$0xf]
    %v338 = vld [vmem:[%s3 + $0x38] sm:$0xf]
    %v339 = vld [vmem:[%s3 + $0x3c] sm:$0xf]
    %v340 = vld [vmem:[%s3 + $0x40] sm:$0xf]
    %v341 = vld [vmem:[%s3 + $0x44] sm:$0xf]
    %v342 = vld [vmem:[%s3 + $0x48] sm:$0xf]
    %v343 = vld [vmem:[%s3 + $0x4c] sm:$0xf]
    %v344 = vld [vmem:[%s3 + $0x50] sm:$0xf]
    %v345 = vld [vmem:[%s3 + $0x54] sm:$0xf]
    %v346 = vld [vmem:[%s3 + $0x58] sm:$0xf]
    %v347 = vld [vmem:[%s3 + $0x5c] sm:$0xf]
    %v348 = vld [vmem:[%s3 + $0x60] sm:$0xf]
    %v349 = vld [vmem:[%s3 + $0x64] sm:$0xf]
    %v350 = vld [vmem:[%s3 + $0x68] sm:$0xf]
    %v351 = vld [vmem:[%s3 + $0x6c] sm:$0xf]
    %v352 = vld [vmem:[%s3 + $0x70] sm:$0xf]
    %v353 = vld [vmem:[%s3 + $0x74] sm:$0xf]
    %v354 = vld [vmem:[%s3 + $0x78] sm:$0xf]
    %v355 = vld [vmem:[%s3 + $0x7c] sm:$0xf]
    %v356 = vld [vmem:[%s3 + $0x80] sm:$0xf]
    %v357 = vld [vmem:[%s3 + $0x84] sm:$0xf]
    %v358 = vld [vmem:[%s3 + $0x88] sm:$0xf]
    %v359 = vld [vmem:[%s3 + $0x8c] sm:$0xf]
    %v360 = vld [vmem:[%s3 + $0x90] sm:$0xf]
    %v361 = vld [vmem:[%s3 + $0x94] sm:$0xf]
    %v362 = vld [vmem:[%s3 + $0x98] sm:$0xf]
    %v363 = vld [vmem:[%s3 + $0x9c] sm:$0xf]
    %v364 = vld [vmem:[%s3 + $0xa0] sm:$0xf]
    %v365 = vld [vmem:[%s3 + $0xa4] sm:$0xf]
    %v366 = vld [vmem:[%s3 + $0xa8] sm:$0xf]
    %v367 = vld [vmem:[%s3 + $0xac] sm:$0xf]
    %v368 = vld [vmem:[%s3 + $0xb0] sm:$0xf]
    %v369 = vld [vmem:[%s3 + $0xb4] sm:$0xf]
    %v370 = vld [vmem:[%s3 + $0xb8] sm:$0xf]
    %v371 = vld [vmem:[%s3 + $0xbc] sm:$0xf]
    %v372 = vld [vmem:[%s3 + $0xc0] sm:$0xf]
    %v373 = vld [vmem:[%s3 + $0xc4] sm:$0xf]
    %v374 = vld [vmem:[%s3 + $0xc8] sm:$0xf]
    %v375 = vld [vmem:[%s3 + $0xcc] sm:$0xf]
    %v376 = vld [vmem:[%s3 + $0xd0] sm:$0xf]
    %v377 = vld [vmem:[%s3 + $0xd4] sm:$0xf]
    %v378 = vld [vmem:[%s3 + $0xd8] sm:$0xf]
    %v379 = vld [vmem:[%s3 + $0xdc] sm:$0xf]
    %v380 = vld [vmem:[%s3 + $0xe0] sm:$0xf]
    %v381 = vld [vmem:[%s3 + $0xe4] sm:$0xf]
    %v382 = vld [vmem:[%s3 + $0xe8] sm:$0xf]
    %v383 = vld [vmem:[%s3 + $0xec] sm:$0xf]
    %v384 = vld [vmem:[%s3 + $0xf0] sm:$0xf]
    %v385 = vld [vmem:[%s3 + $0xf4] sm:$0xf]
    %v386 = vld [vmem:[%s3 + $0xf8] sm:$0xf]
    %v387 = vld [vmem:[%s3 + $0xfc] sm:$0xf]
    %v452 = vunpack.c.l.b16 %v324
    %v453 = vunpack.c.l.b16 %v325
    %v454 = vunpack.c.l.b16 %v326
    %v455 = vunpack.c.l.b16 %v327
    %v456 = vunpack.c.l.b16 %v328
    %v457 = vunpack.c.l.b16 %v329
    %v458 = vunpack.c.l.b16 %v330
    %v459 = vunpack.c.l.b16 %v331
    %v460 = vunpack.c.l.b16 %v332
    %v461 = vunpack.c.l.b16 %v333
    %v462 = vunpack.c.l.b16 %v334
    %v463 = vunpack.c.l.b16 %v335
    %v464 = vunpack.c.l.b16 %v336
    %v465 = vunpack.c.l.b16 %v337
    %v466 = vunpack.c.l.b16 %v338
    %v467 = vunpack.c.l.b16 %v339
    %v468 = vunpack.c.l.b16 %v340
    %v469 = vunpack.c.l.b16 %v341
    %v470 = vunpack.c.l.b16 %v342
    %v471 = vunpack.c.l.b16 %v343
    %v472 = vunpack.c.l.b16 %v344
    %v473 = vunpack.c.l.b16 %v345
    %v474 = vunpack.c.l.b16 %v346
    %v475 = vunpack.c.l.b16 %v347
    %v476 = vunpack.c.l.b16 %v348
    %v477 = vunpack.c.l.b16 %v349
    %v478 = vunpack.c.l.b16 %v350
    %v479 = vunpack.c.l.b16 %v351
    %v480 = vunpack.c.l.b16 %v352
    %v481 = vunpack.c.l.b16 %v353
    %v482 = vunpack.c.l.b16 %v354
    %v483 = vunpack.c.l.b16 %v355
    %v484 = vunpack.c.l.b16 %v356
    %v485 = vunpack.c.l.b16 %v357
    %v486 = vunpack.c.l.b16 %v358
    %v487 = vunpack.c.l.b16 %v359
    %v488 = vunpack.c.l.b16 %v360
    %v489 = vunpack.c.l.b16 %v361
    %v490 = vunpack.c.l.b16 %v362
    %v491 = vunpack.c.l.b16 %v363
    %v492 = vunpack.c.l.b16 %v364
    %v493 = vunpack.c.l.b16 %v365
    %v494 = vunpack.c.l.b16 %v366
    %v495 = vunpack.c.l.b16 %v367
    %v496 = vunpack.c.l.b16 %v368
    %v497 = vunpack.c.l.b16 %v369
    %v498 = vunpack.c.l.b16 %v370
    %v499 = vunpack.c.l.b16 %v371
    %v500 = vunpack.c.l.b16 %v372
    %v501 = vunpack.c.l.b16 %v373
    %v502 = vunpack.c.l.b16 %v374
    %v503 = vunpack.c.l.b16 %v375
    %v504 = vunpack.c.l.b16 %v376
    %v505 = vunpack.c.l.b16 %v377
    %v506 = vunpack.c.l.b16 %v378
    %v507 = vunpack.c.l.b16 %v379
    %v508 = vunpack.c.l.b16 %v380
    %v509 = vunpack.c.l.b16 %v381
    %v510 = vunpack.c.l.b16 %v382
    %v511 = vunpack.c.l.b16 %v383
    %v512 = vunpack.c.l.b16 %v384
    %v513 = vunpack.c.l.b16 %v385
    %v514 = vunpack.c.l.b16 %v386
    %v515 = vunpack.c.l.b16 %v387
    %v516 = vpack.c.b16 %v453, %v452
    %v517 = vpack.c.b16 %v455, %v454
    %v518 = vpack.c.b16 %v457, %v456
    %v519 = vpack.c.b16 %v459, %v458
    %v520 = vpack.c.b16 %v461, %v460
    %v521 = vpack.c.b16 %v463, %v462
    %v522 = vpack.c.b16 %v465, %v464
    %v523 = vpack.c.b16 %v467, %v466
    %v524 = vpack.c.b16 %v469, %v468
    %v525 = vpack.c.b16 %v471, %v470
    %v526 = vpack.c.b16 %v473, %v472
    %v527 = vpack.c.b16 %v475, %v474
    %v528 = vpack.c.b16 %v477, %v476
    %v529 = vpack.c.b16 %v479, %v478
    %v530 = vpack.c.b16 %v481, %v480
    %v531 = vpack.c.b16 %v483, %v482
    %v532 = vpack.c.b16 %v485, %v484
    %v533 = vpack.c.b16 %v487, %v486
    %v534 = vpack.c.b16 %v489, %v488
    %v535 = vpack.c.b16 %v491, %v490
    %v536 = vpack.c.b16 %v493, %v492
    %v537 = vpack.c.b16 %v495, %v494
    %v538 = vpack.c.b16 %v497, %v496
    %v539 = vpack.c.b16 %v499, %v498
    %v540 = vpack.c.b16 %v501, %v500
    %v541 = vpack.c.b16 %v503, %v502
    %v542 = vpack.c.b16 %v505, %v504
    %v543 = vpack.c.b16 %v507, %v506
    %v544 = vpack.c.b16 %v509, %v508
    %v545 = vpack.c.b16 %v511, %v510
    %v546 = vpack.c.b16 %v513, %v512
    %v547 = vpack.c.b16 %v515, %v514
    %v549 = vsel %vm68, %v516, 0
    %v552 = vsel %vm68, %v517, 0
    %v555 = vsel %vm68, %v518, 0
    %v558 = vsel %vm68, %v519, 0
    %v561 = vsel %vm68, %v520, 0
    %v564 = vsel %vm68, %v521, 0
    %v567 = vsel %vm68, %v522, 0
    %v570 = vsel %vm68, %v523, 0
    %v573 = vsel %vm68, %v524, 0
    %v576 = vsel %vm68, %v525, 0
    %v579 = vsel %vm68, %v526, 0
    %v582 = vsel %vm68, %v527, 0
    %v585 = vsel %vm68, %v528, 0
    %v588 = vsel %vm68, %v529, 0
    %v591 = vsel %vm68, %v530, 0
    %v594 = vsel %vm68, %v531, 0
    %v597 = vsel %vm68, %v532, 0
    %v600 = vsel %vm68, %v533, 0
    %v603 = vsel %vm68, %v534, 0
    %v606 = vsel %vm68, %v535, 0
    %v609 = vsel %vm68, %v536, 0
    %v612 = vsel %vm68, %v537, 0
    %v615 = vsel %vm68, %v538, 0
    %v618 = vsel %vm68, %v539, 0
    %v621 = vsel %vm68, %v540, 0
    %v624 = vsel %vm68, %v541, 0
    %v627 = vsel %vm68, %v542, 0
    %v630 = vsel %vm68, %v543, 0
    %v633 = vsel %vm68, %v544, 0
    %v636 = vsel %vm68, %v545, 0
    %v639 = vsel %vm68, %v546, 0
    %v642 = vsel %vm68, %v547, 0
    %644 = vmatprep.subr.bf16.mxu0 0
    %645 = vmatpush1.bf16.msra.mxu0 %v320
    %646 = vmatprep.subr.bf16.mxu0 0
    %647 = vmatpush1.bf16.msra.mxu0 %v321
    %648 = vmatprep.subr.bf16.mxu0 0
    %649 = vmatpush1.bf16.msra.mxu0 %v322
    %650 = vmatprep.subr.bf16.mxu0 0
    %651 = vmatpush1.bf16.msra.mxu0 %v323
    %652 = vmatprep.subr.bf16.mxu0 0
    %653 = vmatpush1.bf16.msra.mxu0 0
    %654 = vmatprep.subr.bf16.mxu0 0
    %655 = vmatpush1.bf16.msra.mxu0 0
    %656 = vmatprep.subr.bf16.mxu0 0
    %657 = vmatpush1.bf16.msra.mxu0 0
    %658 = vmatprep.subr.bf16.mxu0 0
    %659 = vmatpush1.bf16.msra.mxu0 0
    %660 = vmatprep.subr.bf16.mxu0 0
    %661 = vmatpush1.bf16.msra.mxu0 0
    %662 = vmatprep.subr.bf16.mxu0 0
    %663 = vmatpush1.bf16.msra.mxu0 0
    %664 = vmatprep.subr.bf16.mxu0 0
    %665 = vmatpush1.bf16.msra.mxu0 0
    %666 = vmatprep.subr.bf16.mxu0 0
    %667 = vmatpush1.bf16.msra.mxu0 0
    %668 = vmatprep.subr.bf16.mxu0 0
    %669 = vmatpush1.bf16.msra.mxu0 0
    %670 = vmatprep.subr.bf16.mxu0 0
    %671 = vmatpush1.bf16.msra.mxu0 0
    %672 = vmatprep.subr.bf16.mxu0 0
    %673 = vmatpush1.bf16.msra.mxu0 0
    %674 = vmatprep.subr.bf16.mxu0 0
    %675 = vmatpush1.bf16.msra.mxu0 0
    %676 = vmatprep.mubr.bf16.mxu0 0
    %677 = vmatmul.mubr.bf16.gmra.mrb[0].mxu0 %v549
    %v678 = vpop.f32.mrb[0].mxu0
    %v679 = vadd.f32 0.0, %v678
    %v680 = vpop.f32.mrb[0].mxu0
    %v681 = vpop.f32.mrb[0].mxu0
    %v682 = vadd.f32 0.0, %v681
    %v683 = vpop.f32.mrb[0].mxu0
    %684 = vmatprep.mubr.bf16.mxu0 0
    %685 = vmatmul.mubr.bf16.gmra.mrb[0].mxu0 %v552
    %v686 = vpop.f32.mrb[0].mxu0
    %v687 = vadd.f32 0.0, %v686
    %v688 = vpop.f32.mrb[0].mxu0
    %v689 = vpop.f32.mrb[0].mxu0
    %v690 = vadd.f32 0.0, %v689
    %v691 = vpop.f32.mrb[0].mxu0
    %692 = vmatprep.mubr.bf16.mxu0 0
    %693 = vmatmul.mubr.bf16.gmra.mrb[0].mxu0 %v555
    %v694 = vpop.f32.mrb[0].mxu0
    %v695 = vadd.f32 0.0, %v694
    %v696 = vpop.f32.mrb[0].mxu0
    %v697 = vpop.f32.mrb[0].mxu0
    %v698 = vadd.f32 0.0, %v697
    %v699 = vpop.f32.mrb[0].mxu0
    %700 = vmatprep.mubr.bf16.mxu0 0
    %701 = vmatmul.mubr.bf16.gmra.mrb[0].mxu0 %v558
    %v702 = vpop.f32.mrb[0].mxu0
    %v703 = vadd.f32 0.0, %v702
    %v704 = vpop.f32.mrb[0].mxu0
    %v705 = vpop.f32.mrb[0].mxu0
    %v706 = vadd.f32 0.0, %v705
    %v707 = vpop.f32.mrb[0].mxu0
    %708 = vmatprep.mubr.bf16.mxu0 0
    %709 = vmatmul.mubr.bf16.gmra.mrb[0].mxu0 %v561
    %v710 = vpop.f32.mrb[0].mxu0
    %v711 = vadd.f32 0.0, %v710
    %v712 = vpop.f32.mrb[0].mxu0
    %v713 = vpop.f32.mrb[0].mxu0
    %v714 = vadd.f32 0.0, %v713
    %v715 = vpop.f32.mrb[0].mxu0
    %716 = vmatprep.mubr.bf16.mxu0 0
    %717 = vmatmul.mubr.bf16.gmra.mrb[0].mxu0 %v564
    %v718 = vpop.f32.mrb[0].mxu0
    %v719 = vadd.f32 0.0, %v718
    %v720 = vpop.f32.mrb[0].mxu0
    %v721 = vpop.f32.mrb[0].mxu0
    %v722 = vadd.f32 0.0, %v721
    %v723 = vpop.f32.mrb[0].mxu0
    %724 = vmatprep.mubr.bf16.mxu0 0
    %725 = vmatmul.mubr.bf16.gmra.mrb[0].mxu0 %v567
    %v726 = vpop.f32.mrb[0].mxu0
    %v727 = vadd.f32 0.0, %v726
    %v728 = vpop.f32.mrb[0].mxu0
    %v729 = vpop.f32.mrb[0].mxu0
    %v730 = vadd.f32 0.0, %v729
    %v731 = vpop.f32.mrb[0].mxu0
    %732 = vmatprep.mubr.bf16.mxu0 0
    %733 = vmatmul.mubr.bf16.gmra.mrb[0].mxu0 %v570
    %v734 = vpop.f32.mrb[0].mxu0
    %v735 = vadd.f32 0.0, %v734
    %v736 = vpop.f32.mrb[0].mxu0
    %v737 = vpop.f32.mrb[0].mxu0
    %v738 = vadd.f32 0.0, %v737
    %v739 = vpop.f32.mrb[0].mxu0
    %740 = vmatprep.mubr.bf16.mxu0 0
    %741 = vmatmul.mubr.bf16.gmra.mrb[0].mxu0 %v573
    %v742 = vpop.f32.mrb[0].mxu0
    %v743 = vadd.f32 0.0, %v742
    %v744 = vpop.f32.mrb[0].mxu0
    %v745 = vpop.f32.mrb[0].mxu0
    %v746 = vadd.f32 0.0, %v745
    %v747 = vpop.f32.mrb[0].mxu0
    %748 = vmatprep.mubr.bf16.mxu0 0
    %749 = vmatmul.mubr.bf16.gmra.mrb[0].mxu0 %v576
    %v750 = vpop.f32.mrb[0].mxu0
    %v751 = vadd.f32 0.0, %v750
    %v752 = vpop.f32.mrb[0].mxu0
    %v753 = vpop.f32.mrb[0].mxu0
    %v754 = vadd.f32 0.0, %v753
    %v755 = vpop.f32.mrb[0].mxu0
    %756 = vmatprep.mubr.bf16.mxu0 0
    %757 = vmatmul.mubr.bf16.gmra.mrb[0].mxu0 %v579
    %v758 = vpop.f32.mrb[0].mxu0
    %v759 = vadd.f32 0.0, %v758
    %v760 = vpop.f32.mrb[0].mxu0
    %v761 = vpop.f32.mrb[0].mxu0
    %v762 = vadd.f32 0.0, %v761
    %v763 = vpop.f32.mrb[0].mxu0
    %764 = vmatprep.mubr.bf16.mxu0 0
    %765 = vmatmul.mubr.bf16.gmra.mrb[0].mxu0 %v582
    %v766 = vpop.f32.mrb[0].mxu0
    %v767 = vadd.f32 0.0, %v766
    %v768 = vpop.f32.mrb[0].mxu0
    %v769 = vpop.f32.mrb[0].mxu0
    %v770 = vadd.f32 0.0, %v769
    %v771 = vpop.f32.mrb[0].mxu0
    %772 = vmatprep.mubr.bf16.mxu0 0
    %773 = vmatmul.mubr.bf16.gmra.mrb[0].mxu0 %v585
    %v774 = vpop.f32.mrb[0].mxu0
    %v775 = vadd.f32 0.0, %v774
    %v776 = vpop.f32.mrb[0].mxu0
    %v777 = vpop.f32.mrb[0].mxu0
    %v778 = vadd.f32 0.0, %v777
    %v779 = vpop.f32.mrb[0].mxu0
    %780 = vmatprep.mubr.bf16.mxu0 0
    %781 = vmatmul.mubr.bf16.gmra.mrb[0].mxu0 %v588
    %v782 = vpop.f32.mrb[0].mxu0
    %v783 = vadd.f32 0.0, %v782
    %v784 = vpop.f32.mrb[0].mxu0
    %v785 = vpop.f32.mrb[0].mxu0
    %v786 = vadd.f32 0.0, %v785
    %v787 = vpop.f32.mrb[0].mxu0
    %788 = vmatprep.mubr.bf16.mxu0 0
    %789 = vmatmul.mubr.bf16.gmra.mrb[0].mxu0 %v591
    %v790 = vpop.f32.mrb[0].mxu0
    %v791 = vadd.f32 0.0, %v790
    %v792 = vpop.f32.mrb[0].mxu0
    %v793 = vpop.f32.mrb[0].mxu0
    %v794 = vadd.f32 0.0, %v793
    %v795 = vpop.f32.mrb[0].mxu0
    %796 = vmatprep.mubr.bf16.mxu0 0
    %797 = vmatmul.mubr.bf16.gmra.mrb[0].mxu0 %v594
    %v798 = vpop.f32.mrb[0].mxu0
    %v799 = vadd.f32 0.0, %v798
    %v800 = vpop.f32.mrb[0].mxu0
    %v801 = vpop.f32.mrb[0].mxu0
    %v802 = vadd.f32 0.0, %v801
    %v803 = vpop.f32.mrb[0].mxu0
    %804 = vmatprep.mubr.bf16.mxu0 0
    %805 = vmatmul.mubr.bf16.gmra.mrb[0].mxu0 %v597
    %v806 = vpop.f32.mrb[0].mxu0
    %v807 = vadd.f32 0.0, %v806
    %v808 = vpop.f32.mrb[0].mxu0
    %v809 = vpop.f32.mrb[0].mxu0
    %v810 = vadd.f32 0.0, %v809
    %v811 = vpop.f32.mrb[0].mxu0
    %812 = vmatprep.mubr.bf16.mxu0 0
    %813 = vmatmul.mubr.bf16.gmra.mrb[0].mxu0 %v600
    %v814 = vpop.f32.mrb[0].mxu0
    %v815 = vadd.f32 0.0, %v814
    %v816 = vpop.f32.mrb[0].mxu0
    %v817 = vpop.f32.mrb[0].mxu0
    %v818 = vadd.f32 0.0, %v817
    %v819 = vpop.f32.mrb[0].mxu0
    %820 = vmatprep.mubr.bf16.mxu0 0
    %821 = vmatmul.mubr.bf16.gmra.mrb[0].mxu0 %v603
    %v822 = vpop.f32.mrb[0].mxu0
    %v823 = vadd.f32 0.0, %v822
    %v824 = vpop.f32.mrb[0].mxu0
    %v825 = vpop.f32.mrb[0].mxu0
    %v826 = vadd.f32 0.0, %v825
    %v827 = vpop.f32.mrb[0].mxu0
    %828 = vmatprep.mubr.bf16.mxu0 0
    %829 = vmatmul.mubr.bf16.gmra.mrb[0].mxu0 %v606
    %v830 = vpop.f32.mrb[0].mxu0
    %v831 = vadd.f32 0.0, %v830
    %v832 = vpop.f32.mrb[0].mxu0
    %v833 = vpop.f32.mrb[0].mxu0
    %v834 = vadd.f32 0.0, %v833
    %v835 = vpop.f32.mrb[0].mxu0
    %836 = vmatprep.mubr.bf16.mxu0 0
    %837 = vmatmul.mubr.bf16.gmra.mrb[0].mxu0 %v609
    %v838 = vpop.f32.mrb[0].mxu0
    %v839 = vadd.f32 0.0, %v838
    %v840 = vpop.f32.mrb[0].mxu0
    %v841 = vpop.f32.mrb[0].mxu0
    %v842 = vadd.f32 0.0, %v841
    %v843 = vpop.f32.mrb[0].mxu0
    %844 = vmatprep.mubr.bf16.mxu0 0
    %845 = vmatmul.mubr.bf16.gmra.mrb[0].mxu0 %v612
    %v846 = vpop.f32.mrb[0].mxu0
    %v847 = vadd.f32 0.0, %v846
    %v848 = vpop.f32.mrb[0].mxu0
    %v849 = vpop.f32.mrb[0].mxu0
    %v850 = vadd.f32 0.0, %v849
    %v851 = vpop.f32.mrb[0].mxu0
    %852 = vmatprep.mubr.bf16.mxu0 0
    %853 = vmatmul.mubr.bf16.gmra.mrb[0].mxu0 %v615
    %v854 = vpop.f32.mrb[0].mxu0
    %v855 = vadd.f32 0.0, %v854
    %v856 = vpop.f32.mrb[0].mxu0
    %v857 = vpop.f32.mrb[0].mxu0
    %v858 = vadd.f32 0.0, %v857
    %v859 = vpop.f32.mrb[0].mxu0
    %860 = vmatprep.mubr.bf16.mxu0 0
    %861 = vmatmul.mubr.bf16.gmra.mrb[0].mxu0 %v618
    %v862 = vpop.f32.mrb[0].mxu0
    %v863 = vadd.f32 0.0, %v862
    %v864 = vpop.f32.mrb[0].mxu0
    %v865 = vpop.f32.mrb[0].mxu0
    %v866 = vadd.f32 0.0, %v865
    %v867 = vpop.f32.mrb[0].mxu0
    %868 = vmatprep.mubr.bf16.mxu0 0
    %869 = vmatmul.mubr.bf16.gmra.mrb[0].mxu0 %v621
    %v870 = vpop.f32.mrb[0].mxu0
    %v871 = vadd.f32 0.0, %v870
    %v872 = vpop.f32.mrb[0].mxu0
    %v873 = vpop.f32.mrb[0].mxu0
    %v874 = vadd.f32 0.0, %v873
    %v875 = vpop.f32.mrb[0].mxu0
    %876 = vmatprep.mubr.bf16.mxu0 0
    %877 = vmatmul.mubr.bf16.gmra.mrb[0].mxu0 %v624
    %v878 = vpop.f32.mrb[0].mxu0
    %v879 = vadd.f32 0.0, %v878
    %v880 = vpop.f32.mrb[0].mxu0
    %v881 = vpop.f32.mrb[0].mxu0
    %v882 = vadd.f32 0.0, %v881
    %v883 = vpop.f32.mrb[0].mxu0
    %884 = vmatprep.mubr.bf16.mxu0 0
    %885 = vmatmul.mubr.bf16.gmra.mrb[0].mxu0 %v627
    %v886 = vpop.f32.mrb[0].mxu0
    %v887 = vadd.f32 0.0, %v886
    %v888 = vpop.f32.mrb[0].mxu0
    %v889 = vpop.f32.mrb[0].mxu0
    %v890 = vadd.f32 0.0, %v889
    %v891 = vpop.f32.mrb[0].mxu0
    %892 = vmatprep.mubr.bf16.mxu0 0
    %893 = vmatmul.mubr.bf16.gmra.mrb[0].mxu0 %v630
    %v894 = vpop.f32.mrb[0].mxu0
    %v895 = vadd.f32 0.0, %v894
    %v896 = vpop.f32.mrb[0].mxu0
    %v897 = vpop.f32.mrb[0].mxu0
    %v898 = vadd.f32 0.0, %v897
    %v899 = vpop.f32.mrb[0].mxu0
    %900 = vmatprep.mubr.bf16.mxu0 0
    %901 = vmatmul.mubr.bf16.gmra.mrb[0].mxu0 %v633
    %v902 = vpop.f32.mrb[0].mxu0
    %v903 = vadd.f32 0.0, %v902
    %v904 = vpop.f32.mrb[0].mxu0
    %v905 = vpop.f32.mrb[0].mxu0
    %v906 = vadd.f32 0.0, %v905
    %v907 = vpop.f32.mrb[0].mxu0
    %908 = vmatprep.mubr.bf16.mxu0 0
    %909 = vmatmul.mubr.bf16.gmra.mrb[0].mxu0 %v636
    %v910 = vpop.f32.mrb[0].mxu0
    %v911 = vadd.f32 0.0, %v910
    %v912 = vpop.f32.mrb[0].mxu0
    %v913 = vpop.f32.mrb[0].mxu0
    %v914 = vadd.f32 0.0, %v913
    %v915 = vpop.f32.mrb[0].mxu0
    %916 = vmatprep.mubr.bf16.mxu0 0
    %917 = vmatmul.mubr.bf16.gmra.mrb[0].mxu0 %v639
    %v918 = vpop.f32.mrb[0].mxu0
    %v919 = vadd.f32 0.0, %v918
    %v920 = vpop.f32.mrb[0].mxu0
    %v921 = vpop.f32.mrb[0].mxu0
    %v922 = vadd.f32 0.0, %v921
    %v923 = vpop.f32.mrb[0].mxu0
    %924 = vmatprep.mubr.bf16.mxu0 0
    %925 = vmatmul.mubr.bf16.gmra.mrb[0].mxu0 %v642
    %v926 = vpop.f32.mrb[0].mxu0
    %v927 = vadd.f32 0.0, %v926
    %v928 = vpop.f32.mrb[0].mxu0
    %v929 = vpop.f32.mrb[0].mxu0
    %v930 = vadd.f32 0.0, %v929
    %v931 = vpop.f32.mrb[0].mxu0
    %932 = vdwg.mxu0
    %v933 = vtanh.pop %v679
    %v934 = vtanh.pop %v682
    %v935 = vtanh.pop %v687
    %v936 = vtanh.pop %v690
    %v937 = vtanh.pop %v695
    %v938 = vtanh.pop %v698
    %v939 = vtanh.pop %v703
    %v940 = vtanh.pop %v706
    %v941 = vtanh.pop %v711
    %v942 = vtanh.pop %v714
    %v943 = vtanh.pop %v719
    %v944 = vtanh.pop %v722
    %v945 = vtanh.pop %v727
    %v946 = vtanh.pop %v730
    %v947 = vtanh.pop %v735
    %v948 = vtanh.pop %v738
    %v949 = vtanh.pop %v743
    %v950 = vtanh.pop %v746
    %v951 = vtanh.pop %v751
    %v952 = vtanh.pop %v754
    %v953 = vtanh.pop %v759
    %v954 = vtanh.pop %v762
    %v955 = vtanh.pop %v767
    %v956 = vtanh.pop %v770
    %v957 = vtanh.pop %v775
    %v958 = vtanh.pop %v778
    %v959 = vtanh.pop %v783
    %v960 = vtanh.pop %v786
    %v961 = vtanh.pop %v791
    %v962 = vtanh.pop %v794
    %v963 = vtanh.pop %v799
    %v964 = vtanh.pop %v802
    %v965 = vtanh.pop %v807
    %v966 = vtanh.pop %v810
    %v967 = vtanh.pop %v815
    %v968 = vtanh.pop %v818
    %v969 = vtanh.pop %v823
    %v970 = vtanh.pop %v826
    %v971 = vtanh.pop %v831
    %v972 = vtanh.pop %v834
    %v973 = vtanh.pop %v839
    %v974 = vtanh.pop %v842
    %v975 = vtanh.pop %v847
    %v976 = vtanh.pop %v850
    %v977 = vtanh.pop %v855
    %v978 = vtanh.pop %v858
    %v979 = vtanh.pop %v863
    %v980 = vtanh.pop %v866
    %v981 = vtanh.pop %v871
    %v982 = vtanh.pop %v874
    %v983 = vtanh.pop %v879
    %v984 = vtanh.pop %v882
    %v985 = vtanh.pop %v887
    %v986 = vtanh.pop %v890
    %v987 = vtanh.pop %v895
    %v988 = vtanh.pop %v898
    %v989 = vtanh.pop %v903
    %v990 = vtanh.pop %v906
    %v991 = vtanh.pop %v911
    %v992 = vtanh.pop %v914
    %v993 = vtanh.pop %v919
    %v994 = vtanh.pop %v922
    %v995 = vtanh.pop %v927
    %v996 = vtanh.pop %v930
    %v997 = vld [vmem:[%s4] sm:$0xff]
    %v998 = vld [vmem:[%s4 + $0x8] sm:$0xff]
    %v999 = vld [vmem:[%s4 + $0x10] sm:$0xff]
    %v1000 = vld [vmem:[%s4 + $0x18] sm:$0xff]
    %v1001 = vpack.c.bf16 %v934, %v933
    %v1002 = vpack.c.bf16 %v936, %v935
    %v1003 = vpack.c.bf16 %v938, %v937
    %v1004 = vpack.c.bf16 %v940, %v939
    %v1005 = vpack.c.bf16 %v942, %v941
    %v1006 = vpack.c.bf16 %v944, %v943
    %v1007 = vpack.c.bf16 %v946, %v945
    %v1008 = vpack.c.bf16 %v948, %v947
    %v1009 = vpack.c.bf16 %v950, %v949
    %v1010 = vpack.c.bf16 %v952, %v951
    %v1011 = vpack.c.bf16 %v954, %v953
    %v1012 = vpack.c.bf16 %v956, %v955
    %v1013 = vpack.c.bf16 %v958, %v957
    %v1014 = vpack.c.bf16 %v960, %v959
    %v1015 = vpack.c.bf16 %v962, %v961
    %v1016 = vpack.c.bf16 %v964, %v963
    %v1017 = vpack.c.bf16 %v966, %v965
    %v1018 = vpack.c.bf16 %v968, %v967
    %v1019 = vpack.c.bf16 %v970, %v969
    %v1020 = vpack.c.bf16 %v972, %v971
    %v1021 = vpack.c.bf16 %v974, %v973
    %v1022 = vpack.c.bf16 %v976, %v975
    %v1023 = vpack.c.bf16 %v978, %v977
    %v1024 = vpack.c.bf16 %v980, %v979
    %v1025 = vpack.c.bf16 %v982, %v981
    %v1026 = vpack.c.bf16 %v984, %v983
    %v1027 = vpack.c.bf16 %v986, %v985
    %v1028 = vpack.c.bf16 %v988, %v987
    %v1029 = vpack.c.bf16 %v990, %v989
    %v1030 = vpack.c.bf16 %v992, %v991
    %v1031 = vpack.c.bf16 %v994, %v993
    %v1032 = vpack.c.bf16 %v996, %v995
    %v1037 = vunpack.c.l.b16 %v997
    %v1038 = vunpack.c.h.b16 %v997
    %v1039 = vunpack.c.l.b16 %v998
    %v1040 = vunpack.c.h.b16 %v998
    %v1041 = vunpack.c.l.b16 %v999
    %v1042 = vunpack.c.h.b16 %v999
    %v1043 = vunpack.c.l.b16 %v1000
    %v1044 = vunpack.c.h.b16 %v1000
    %v1045 = vpack.c.b16 %v1041, %v1037
    %v1046 = vpack.c.b16 %v1042, %v1038
    %v1047 = vpack.c.b16 %v1043, %v1039
    %v1048 = vpack.c.b16 %v1044, %v1040
    %1053 = vmatprep.subr.bf16.mxu0 0
    %1054 = vmatpush1.bf16.msra.mxu0 %v1001
    %1055 = vmatprep.subr.bf16.mxu0 0
    %1056 = vmatpush1.bf16.msra.mxu0 %v1002
    %1057 = vmatprep.subr.bf16.mxu0 0
    %1058 = vmatpush1.bf16.msra.mxu0 %v1003
    %1059 = vmatprep.subr.bf16.mxu0 0
    %1060 = vmatpush1.bf16.msra.mxu0 %v1004
    %1061 = vmatprep.subr.bf16.mxu0 0
    %1062 = vmatpush1.bf16.msra.mxu0 %v1005
    %1063 = vmatprep.subr.bf16.mxu0 0
    %1064 = vmatpush1.bf16.msra.mxu0 %v1006
    %1065 = vmatprep.subr.bf16.mxu0 0
    %1066 = vmatpush1.bf16.msra.mxu0 %v1007
    %1067 = vmatprep.subr.bf16.mxu0 0
    %1068 = vmatpush1.bf16.msra.mxu0 %v1008
    %1069 = vmatprep.subr.bf16.mxu0 0
    %1070 = vmatpush1.bf16.msra.mxu0 %v1009
    %1071 = vmatprep.subr.bf16.mxu0 0
    %1072 = vmatpush1.bf16.msra.mxu0 %v1010
    %1073 = vmatprep.subr.bf16.mxu0 0
    %1074 = vmatpush1.bf16.msra.mxu0 %v1011
    %1075 = vmatprep.subr.bf16.mxu0 0
    %1076 = vmatpush1.bf16.msra.mxu0 %v1012
    %1077 = vmatprep.subr.bf16.mxu0 0
    %1078 = vmatpush1.bf16.msra.mxu0 %v1013
    %1079 = vmatprep.subr.bf16.mxu0 0
    %1080 = vmatpush1.bf16.msra.mxu0 %v1014
    %1081 = vmatprep.subr.bf16.mxu0 0
    %1082 = vmatpush1.bf16.msra.mxu0 %v1015
    %1083 = vmatprep.subr.bf16.mxu0 0
    %1084 = vmatpush1.bf16.msra.mxu0 %v1016
    %1085 = vmatprep.mubr.bf16.mxu0 %v1046
    %1086 = vmatmul.mubr.bf16.gmra.mrb[0].mxu0 %v1045
    %v1087 = vpop.f32.mrb[0].mxu0
    %v1088 = vadd.f32 0.0, %v1087
    %v1089 = vpop.f32.mrb[0].mxu0
    %v1090 = vpop.f32.mrb[0].mxu0
    %v1091 = vadd.f32 0.0, %v1090
    %v1092 = vpop.f32.mrb[0].mxu0
    %1093 = vdwg.mxu0
    %1094 = vmatprep.subr.bf16.mxu0 0
    %1095 = vmatpush1.bf16.msra.mxu0 %v1017
    %1096 = vmatprep.subr.bf16.mxu0 0
    %1097 = vmatpush1.bf16.msra.mxu0 %v1018
    %1098 = vmatprep.subr.bf16.mxu0 0
    %1099 = vmatpush1.bf16.msra.mxu0 %v1019
    %1100 = vmatprep.subr.bf16.mxu0 0
    %1101 = vmatpush1.bf16.msra.mxu0 %v1020
    %1102 = vmatprep.subr.bf16.mxu0 0
    %1103 = vmatpush1.bf16.msra.mxu0 %v1021
    %1104 = vmatprep.subr.bf16.mxu0 0
    %1105 = vmatpush1.bf16.msra.mxu0 %v1022
    %1106 = vmatprep.subr.bf16.mxu0 0
    %1107 = vmatpush1.bf16.msra.mxu0 %v1023
    %1108 = vmatprep.subr.bf16.mxu0 0
    %1109 = vmatpush1.bf16.msra.mxu0 %v1024
    %1110 = vmatprep.subr.bf16.mxu0 0
    %1111 = vmatpush1.bf16.msra.mxu0 %v1025
    %1112 = vmatprep.subr.bf16.mxu0 0
    %1113 = vmatpush1.bf16.msra.mxu0 %v1026
    %1114 = vmatprep.subr.bf16.mxu0 0
    %1115 = vmatpush1.bf16.msra.mxu0 %v1027
    %1116 = vmatprep.subr.bf16.mxu0 0
    %1117 = vmatpush1.bf16.msra.mxu0 %v1028
    %1118 = vmatprep.subr.bf16.mxu0 0
    %1119 = vmatpush1.bf16.msra.mxu0 %v1029
    %1120 = vmatprep.subr.bf16.mxu0 0
    %1121 = vmatpush1.bf16.msra.mxu0 %v1030
    %1122 = vmatprep.subr.bf16.mxu0 0
    %1123 = vmatpush1.bf16.msra.mxu0 %v1031
    %1124 = vmatprep.subr.bf16.mxu0 0
    %1125 = vmatpush1.bf16.msra.mxu0 %v1032
    %1126 = vmatprep.mubr.bf16.mxu0 %v1048
    %1127 = vmatmul.mubr.bf16.gmra.mrb[0].mxu0 %v1047
    %v1128 = vpop.f32.mrb[0].mxu0
    %v1129 = vadd.f32 %v1088, %v1128
    %v1130 = vpop.f32.mrb[0].mxu0
    %v1131 = vpop.f32.mrb[0].mxu0
    %v1132 = vadd.f32 %v1091, %v1131
    %v1133 = vpop.f32.mrb[0].mxu0
    %1134 = vdwg.mxu0
    %v1135 = vld [vmem:[%s3 + $0x100] sm:$0xf]
    %v1136 = vld [vmem:[%s3 + $0x104] sm:$0xf]
    %v1137 = vld [vmem:[%s3 + $0x108] sm:$0xf]
    %v1138 = vld [vmem:[%s3 + $0x10c] sm:$0xf]
    %v1139 = vld [vmem:[%s3 + $0x110] sm:$0xf]
    %v1140 = vld [vmem:[%s3 + $0x114] sm:$0xf]
    %v1141 = vld [vmem:[%s3 + $0x118] sm:$0xf]
    %v1142 = vld [vmem:[%s3 + $0x11c] sm:$0xf]
    %v1143 = vld [vmem:[%s3 + $0x120] sm:$0xf]
    %v1144 = vld [vmem:[%s3 + $0x124] sm:$0xf]
    %v1145 = vld [vmem:[%s3 + $0x128] sm:$0xf]
    %v1146 = vld [vmem:[%s3 + $0x12c] sm:$0xf]
    %v1147 = vld [vmem:[%s3 + $0x130] sm:$0xf]
    %v1148 = vld [vmem:[%s3 + $0x134] sm:$0xf]
    %v1149 = vld [vmem:[%s3 + $0x138] sm:$0xf]
    %v1150 = vld [vmem:[%s3 + $0x13c] sm:$0xf]
    %v1151 = vld [vmem:[%s3 + $0x140] sm:$0xf]
    %v1152 = vld [vmem:[%s3 + $0x144] sm:$0xf]
    %v1153 = vld [vmem:[%s3 + $0x148] sm:$0xf]
    %v1154 = vld [vmem:[%s3 + $0x14c] sm:$0xf]
    %v1155 = vld [vmem:[%s3 + $0x150] sm:$0xf]
    %v1156 = vld [vmem:[%s3 + $0x154] sm:$0xf]
    %v1157 = vld [vmem:[%s3 + $0x158] sm:$0xf]
    %v1158 = vld [vmem:[%s3 + $0x15c] sm:$0xf]
    %v1159 = vld [vmem:[%s3 + $0x160] sm:$0xf]
    %v1160 = vld [vmem:[%s3 + $0x164] sm:$0xf]
    %v1161 = vld [vmem:[%s3 + $0x168] sm:$0xf]
    %v1162 = vld [vmem:[%s3 + $0x16c] sm:$0xf]
    %v1163 = vld [vmem:[%s3 + $0x170] sm:$0xf]
    %v1164 = vld [vmem:[%s3 + $0x174] sm:$0xf]
    %v1165 = vld [vmem:[%s3 + $0x178] sm:$0xf]
    %v1166 = vld [vmem:[%s3 + $0x17c] sm:$0xf]
    %v1167 = vunpack.c.l.bf16 %v1151
    %v1168 = vunpack.c.l.bf16 %v1152
    %v1169 = vunpack.c.l.bf16 %v1153
    %v1170 = vunpack.c.l.bf16 %v1154
    %v1171 = vunpack.c.l.bf16 %v1155
    %v1172 = vunpack.c.l.bf16 %v1156
    %v1173 = vunpack.c.l.bf16 %v1157
    %v1174 = vunpack.c.l.bf16 %v1158
    %v1175 = vunpack.c.l.bf16 %v1159
    %v1176 = vunpack.c.l.bf16 %v1160
    %v1177 = vunpack.c.l.bf16 %v1161
    %v1178 = vunpack.c.l.bf16 %v1162
    %v1179 = vunpack.c.l.bf16 %v1163
    %v1180 = vunpack.c.l.bf16 %v1164
    %v1181 = vunpack.c.l.bf16 %v1165
    %v1182 = vunpack.c.l.bf16 %v1166
    %v1183 = vld [vmem:[%s3 + $0x180] sm:$0xf]
    %v1184 = vld [vmem:[%s3 + $0x184] sm:$0xf]
    %v1185 = vld [vmem:[%s3 + $0x188] sm:$0xf]
    %v1186 = vld [vmem:[%s3 + $0x18c] sm:$0xf]
    %v1187 = vld [vmem:[%s3 + $0x190] sm:$0xf]
    %v1188 = vld [vmem:[%s3 + $0x194] sm:$0xf]
    %v1189 = vld [vmem:[%s3 + $0x198] sm:$0xf]
    %v1190 = vld [vmem:[%s3 + $0x19c] sm:$0xf]
    %v1191 = vld [vmem:[%s3 + $0x1a0] sm:$0xf]
    %v1192 = vld [vmem:[%s3 + $0x1a4] sm:$0xf]
    %v1193 = vld [vmem:[%s3 + $0x1a8] sm:$0xf]
    %v1194 = vld [vmem:[%s3 + $0x1ac] sm:$0xf]
    %v1195 = vld [vmem:[%s3 + $0x1b0] sm:$0xf]
    %v1196 = vld [vmem:[%s3 + $0x1b4] sm:$0xf]
    %v1197 = vld [vmem:[%s3 + $0x1b8] sm:$0xf]
    %v1198 = vld [vmem:[%s3 + $0x1bc] sm:$0xf]
    %v1199 = vunpack.c.l.bf16 %v1183
    %v1200 = vunpack.c.l.bf16 %v1184
    %v1201 = vunpack.c.l.bf16 %v1185
    %v1202 = vunpack.c.l.bf16 %v1186
    %v1203 = vunpack.c.l.bf16 %v1187
    %v1204 = vunpack.c.l.bf16 %v1188
    %v1205 = vunpack.c.l.bf16 %v1189
    %v1206 = vunpack.c.l.bf16 %v1190
    %v1207 = vunpack.c.l.bf16 %v1191
    %v1208 = vunpack.c.l.bf16 %v1192
    %v1209 = vunpack.c.l.bf16 %v1193
    %v1210 = vunpack.c.l.bf16 %v1194
    %v1211 = vunpack.c.l.bf16 %v1195
    %v1212 = vunpack.c.l.bf16 %v1196
    %v1213 = vunpack.c.l.bf16 %v1197
    %v1214 = vunpack.c.l.bf16 %v1198
    %v1215 = vld [vmem:[%s3 + $0x1c0] sm:$0x1]
    %v1216 = vunpack.c.l.bf16 %v1215
    %vm1217 = vcmp.lt.s32.totalorder %v28, 32
    %vm1218 = vcmp.lt.s32.totalorder %v29, 32
    %vm1219 = vcmp.lt.s32.totalorder %v30, 32
    %vm1220 = vcmp.lt.s32.totalorder %v31, 32
    %vm1221 = vcmp.lt.s32.totalorder %v32, 32
    %vm1222 = vcmp.lt.s32.totalorder %v33, 32
    %vm1223 = vcmp.lt.s32.totalorder %v34, 32
    %vm1224 = vcmp.lt.s32.totalorder %v35, 32
    %vm1225 = vcmask 146448
    %v1226 = vsel %vm1225, %v1129, -inf
    %1227 = vmax.xlane.f32.xlu0 %v1226
    %v1228 = vpop.xlane.xlu0 %1227
    %v1229 = vsel %vm1225, %v1132, -inf
    %1230 = vmax.xlane.f32.xlu0 %v1229
    %v1231 = vpop.xlane.xlu0 %1230
    %v1232 = vsub.f32 %v1129, %v1228
    %v1233 = vsub.f32 %v1132, %v1231
    %v1234 = vmul.f32 %v1232, 1.442695
    %v1235 = vpow.pop %v1234
    %v1236 = vmul.f32 %v1233, 1.442695
    %v1237 = vpow.pop %v1236
    %1240 = vrot.lane.b32.xlu0 %v1235, 126
    %v1241 = vpop.permute.xlu0 %1240
    %1242 = vrot.lane.b32.xlu0 %v1237, 126
    %v1243 = vpop.permute.xlu0 %1242
    %vm1246 = vcmask 130048
    %v1247 = vsel %vm1246, %v1241, 0.0
    %1248 = vadd.xlane.f32.xlu0 %v1247
    %v1249 = vpop.xlane.xlu0 %1248
    %v1250 = vsel %vm1246, %v1243, 0.0
    %1251 = vadd.xlane.f32.xlu0 %v1250
    %v1252 = vpop.xlane.xlu0 %1251
    %v1253 = vrcp.pop %v1249
    %v1254 = vmul.f32 %v1235, %v1253
    %v1255 = vrcp.pop %v1252
    %v1256 = vmul.f32 %v1237, %v1255
    %v1257 = vpack.c.bf16 %v1256, %v1254
    %1262 = vrot.lane.b32.xlu0 %v320, 126
    %v1263 = vpop.permute.xlu0 %1262
    %1264 = vrot.lane.b32.xlu0 %v321, 126
    %v1265 = vpop.permute.xlu0 %1264
    %1266 = vrot.lane.b32.xlu0 %v322, 126
    %v1267 = vpop.permute.xlu0 %1266
    %1268 = vrot.lane.b32.xlu0 %v323, 126
    %v1269 = vpop.permute.xlu0 %1268
    %1271 = vrot.lane.b32.xlu0 %v1257, 126
    %v1272 = vpop.permute.xlu0 %1271
    %v1274 = vsel %vm1246, %v1263, 0
    %v1277 = vsel %vm1246, %v1265, 0
    %v1280 = vsel %vm1246, %v1267, 0
    %v1283 = vsel %vm1246, %v1269, 0
    %v1286 = vsel %vm1246, %v1272, 0
    %1288 = vmatprep.subr.bf16.mxu0 0
    %1289 = vmatpush1.bf16.xpose.msra.mxu0 %v1286
    %1290 = vmatprep.subr.bf16.mxu0 0
    %1291 = vmatpush1.bf16.xpose.msra.mxu0 0
    %1292 = vmatprep.subr.bf16.mxu0 0
    %1293 = vmatpush1.bf16.xpose.msra.mxu0 0
    %1294 = vmatprep.subr.bf16.mxu0 0
    %1295 = vmatpush1.bf16.xpose.msra.mxu0 0
    %1296 = vmatprep.subr.bf16.mxu0 0
    %1297 = vmatpush1.bf16.xpose.msra.mxu0 0
    %1298 = vmatprep.subr.bf16.mxu0 0
    %1299 = vmatpush1.bf16.xpose.msra.mxu0 0
    %1300 = vmatprep.subr.bf16.mxu0 0
    %1301 = vmatpush1.bf16.xpose.msra.mxu0 0
    %1302 = vmatprep.subr.bf16.mxu0 0
    %1303 = vmatpush1.bf16.xpose.msra.mxu0 0
    %1304 = vmatprep.subr.bf16.mxu0 0
    %1305 = vmatpush1.bf16.xpose.msra.mxu0 0
    %1306 = vmatprep.subr.bf16.mxu0 0
    %1307 = vmatpush1.bf16.xpose.msra.mxu0 0
    %1308 = vmatprep.subr.bf16.mxu0 0
    %1309 = vmatpush1.bf16.xpose.msra.mxu0 0
    %1310 = vmatprep.subr.bf16.mxu0 0
    %1311 = vmatpush1.bf16.xpose.msra.mxu0 0
    %1312 = vmatprep.subr.bf16.mxu0 0
    %1313 = vmatpush1.bf16.xpose.msra.mxu0 0
    %1314 = vmatprep.subr.bf16.mxu0 0
    %1315 = vmatpush1.bf16.xpose.msra.mxu0 0
    %1316 = vmatprep.subr.bf16.mxu0 0
    %1317 = vmatpush1.bf16.xpose.msra.mxu0 0
    %1318 = vmatprep.subr.bf16.mxu0 0
    %1319 = vmatpush1.bf16.xpose.msra.mxu0 0
    %1320 = vmatprep.mubr.bf16.mxu0 0
    %1321 = vmatmul.mubr.bf16.gmra.mrb[0].mxu0 %v1274
    %v1322 = vpop.f32.mrb[0].mxu0
    %v1323 = vadd.f32 0.0, %v1322
    %v1324 = vpop.f32.mrb[0].mxu0
    %v1325 = vpop.f32.mrb[0].mxu0
    %v1326 = vadd.f32 0.0, %v1325
    %v1327 = vpop.f32.mrb[0].mxu0
    %1328 = vmatprep.mubr.bf16.mxu0 0
    %1329 = vmatmul.mubr.bf16.gmra.mrb[0].mxu0 %v1277
    %v1330 = vpop.f32.mrb[0].mxu0
    %v1331 = vadd.f32 0.0, %v1330
    %v1332 = vpop.f32.mrb[0].mxu0
    %v1333 = vpop.f32.mrb[0].mxu0
    %v1334 = vadd.f32 0.0, %v1333
    %v1335 = vpop.f32.mrb[0].mxu0
    %1336 = vmatprep.mubr.bf16.mxu0 0
    %1337 = vmatmul.mubr.bf16.gmra.mrb[0].mxu0 %v1280
    %v1338 = vpop.f32.mrb[0].mxu0
    %v1339 = vadd.f32 0.0, %v1338
    %v1340 = vpop.f32.mrb[0].mxu0
    %v1341 = vpop.f32.mrb[0].mxu0
    %v1342 = vadd.f32 0.0, %v1341
    %v1343 = vpop.f32.mrb[0].mxu0
    %1344 = vmatprep.mubr.bf16.mxu0 0
    %1345 = vmatmul.mubr.bf16.gmra.mrb[0].mxu0 %v1283
    %v1346 = vpop.f32.mrb[0].mxu0
    %v1347 = vadd.f32 0.0, %v1346
    %v1348 = vpop.f32.mrb[0].mxu0
    %v1349 = vpop.f32.mrb[0].mxu0
    %v1350 = vadd.f32 0.0, %v1349
    %v1351 = vpop.f32.mrb[0].mxu0
    %1352 = vdwg.mxu0
    %1361 = vrot.lane.b32.xlu0 %v1323, 120
    %v1362 = vpop.permute.xlu0 %1361
    %1363 = vrot.lane.b32.xlu0 %v1326, 120
    %v1364 = vpop.permute.xlu0 %1363
    %1365 = vrot.lane.b32.xlu0 %v1331, 120
    %v1366 = vpop.permute.xlu0 %1365
    %1367 = vrot.lane.b32.xlu0 %v1334, 120
    %v1368 = vpop.permute.xlu0 %1367
    %1369 = vrot.lane.b32.xlu0 %v1339, 120
    %v1370 = vpop.permute.xlu0 %1369
    %1371 = vrot.lane.b32.xlu0 %v1342, 120
    %v1372 = vpop.permute.xlu0 %1371
    %1373 = vrot.lane.b32.xlu0 %v1347, 120
    %v1374 = vpop.permute.xlu0 %1373
    %1375 = vrot.lane.b32.xlu0 %v1350, 120
    %v1376 = vpop.permute.xlu0 %1375
    %v1385 = vsel %vm1217, %v1323, %v1362
    %v1386 = vsel %vm1218, %v1326, %v1364
    %v1387 = vsel %vm1219, %v1331, %v1366
    %v1388 = vsel %vm1220, %v1334, %v1368
    %v1389 = vsel %vm1221, %v1339, %v1370
    %v1390 = vsel %vm1222, %v1342, %v1372
    %v1391 = vsel %vm1223, %v1347, %v1374
    %v1392 = vsel %vm1224, %v1350, %v1376
    %v1393 = vpack.c.bf16 %v1386, %v1385
    %v1394 = vpack.c.bf16 %v1388, %v1387
    %v1395 = vpack.c.bf16 %v1390, %v1389
    %v1396 = vpack.c.bf16 %v1392, %v1391
    %1398 = vset.pattern.permute.xlu0 0
    %1399 = vperm.xlu0 %1398, %v1199
    %v1400 = vpop.permute.xlu0 %1399
    %1403 = vset.pattern.permute.xlu0 0
    %1404 = vperm.xlu0 %1403, %v1200
    %v1405 = vpop.permute.xlu0 %1404
    %1408 = vset.pattern.permute.xlu0 0
    %1409 = vperm.xlu0 %1408, %v1201
    %v1410 = vpop.permute.xlu0 %1409
    %1413 = vset.pattern.permute.xlu0 0
    %1414 = vperm.xlu0 %1413, %v1202
    %v1415 = vpop.permute.xlu0 %1414
    %1418 = vset.pattern.permute.xlu0 0
    %1419 = vperm.xlu0 %1418, %v1203
    %v1420 = vpop.permute.xlu0 %1419
    %1423 = vset.pattern.permute.xlu0 0
    %1424 = vperm.xlu0 %1423, %v1204
    %v1425 = vpop.permute.xlu0 %1424
    %1428 = vset.pattern.permute.xlu0 0
    %1429 = vperm.xlu0 %1428, %v1205
    %v1430 = vpop.permute.xlu0 %1429
    %1433 = vset.pattern.permute.xlu0 0
    %1434 = vperm.xlu0 %1433, %v1206
    %v1435 = vpop.permute.xlu0 %1434
    %1438 = vset.pattern.permute.xlu0 0
    %1439 = vperm.xlu0 %1438, %v1207
    %v1440 = vpop.permute.xlu0 %1439
    %1443 = vset.pattern.permute.xlu0 0
    %1444 = vperm.xlu0 %1443, %v1208
    %v1445 = vpop.permute.xlu0 %1444
    %1448 = vset.pattern.permute.xlu0 0
    %1449 = vperm.xlu0 %1448, %v1209
    %v1450 = vpop.permute.xlu0 %1449
    %1453 = vset.pattern.permute.xlu0 0
    %1454 = vperm.xlu0 %1453, %v1210
    %v1455 = vpop.permute.xlu0 %1454
    %1458 = vset.pattern.permute.xlu0 0
    %1459 = vperm.xlu0 %1458, %v1211
    %v1460 = vpop.permute.xlu0 %1459
    %1463 = vset.pattern.permute.xlu0 0
    %1464 = vperm.xlu0 %1463, %v1212
    %v1465 = vpop.permute.xlu0 %1464
    %1468 = vset.pattern.permute.xlu0 0
    %1469 = vperm.xlu0 %1468, %v1213
    %v1470 = vpop.permute.xlu0 %1469
    %1473 = vset.pattern.permute.xlu0 0
    %1474 = vperm.xlu0 %1473, %v1214
    %v1475 = vpop.permute.xlu0 %1474
    %v1493 = vunpack.c.l.b16 %v1135
    %v1494 = vunpack.c.l.b16 %v1136
    %v1495 = vunpack.c.l.b16 %v1137
    %v1496 = vunpack.c.l.b16 %v1138
    %v1497 = vunpack.c.l.b16 %v1139
    %v1498 = vunpack.c.l.b16 %v1140
    %v1499 = vunpack.c.l.b16 %v1141
    %v1500 = vunpack.c.l.b16 %v1142
    %v1501 = vunpack.c.l.b16 %v1143
    %v1502 = vunpack.c.l.b16 %v1144
    %v1503 = vunpack.c.l.b16 %v1145
    %v1504 = vunpack.c.l.b16 %v1146
    %v1505 = vunpack.c.l.b16 %v1147
    %v1506 = vunpack.c.l.b16 %v1148
    %v1507 = vunpack.c.l.b16 %v1149
    %v1508 = vunpack.c.l.b16 %v1150
    %v1509 = vpack.c.b16 %v1494, %v1493
    %v1510 = vpack.c.b16 %v1496, %v1495
    %v1511 = vpack.c.b16 %v1498, %v1497
    %v1512 = vpack.c.b16 %v1500, %v1499
    %v1513 = vpack.c.b16 %v1502, %v1501
    %v1514 = vpack.c.b16 %v1504, %v1503
    %v1515 = vpack.c.b16 %v1506, %v1505
    %v1516 = vpack.c.b16 %v1508, %v1507
    %v1518 = vsel %vm68, %v1509, 0
    %v1521 = vsel %vm68, %v1510, 0
    %v1524 = vsel %vm68, %v1511, 0
    %v1527 = vsel %vm68, %v1512, 0
    %v1530 = vsel %vm68, %v1513, 0
    %v1533 = vsel %vm68, %v1514, 0
    %v1536 = vsel %vm68, %v1515, 0
    %v1539 = vsel %vm68, %v1516, 0
    %1541 = vmatprep.subr.bf16.mxu0 0
    %1542 = vmatpush1.bf16.msra.mxu0 %v1393
    %1543 = vmatprep.subr.bf16.mxu0 0
    %1544 = vmatpush1.bf16.msra.mxu0 %v1394
    %1545 = vmatprep.subr.bf16.mxu0 0
    %1546 = vmatpush1.bf16.msra.mxu0 %v1395
    %1547 = vmatprep.subr.bf16.mxu0 0
    %1548 = vmatpush1.bf16.msra.mxu0 %v1396
    %1549 = vmatprep.subr.bf16.mxu0 0
    %1550 = vmatpush1.bf16.msra.mxu0 0
    %1551 = vmatprep.subr.bf16.mxu0 0
    %1552 = vmatpush1.bf16.msra.mxu0 0
    %1553 = vmatprep.subr.bf16.mxu0 0
    %1554 = vmatpush1.bf16.msra.mxu0 0
    %1555 = vmatprep.subr.bf16.mxu0 0
    %1556 = vmatpush1.bf16.msra.mxu0 0
    %1557 = vmatprep.subr.bf16.mxu0 0
    %1558 = vmatpush1.bf16.msra.mxu0 0
    %1559 = vmatprep.subr.bf16.mxu0 0
    %1560 = vmatpush1.bf16.msra.mxu0 0
    %1561 = vmatprep.subr.bf16.mxu0 0
    %1562 = vmatpush1.bf16.msra.mxu0 0
    %1563 = vmatprep.subr.bf16.mxu0 0
    %1564 = vmatpush1.bf16.msra.mxu0 0
    %1565 = vmatprep.subr.bf16.mxu0 0
    %1566 = vmatpush1.bf16.msra.mxu0 0
    %1567 = vmatprep.subr.bf16.mxu0 0
    %1568 = vmatpush1.bf16.msra.mxu0 0
    %1569 = vmatprep.subr.bf16.mxu0 0
    %1570 = vmatpush1.bf16.msra.mxu0 0
    %1571 = vmatprep.subr.bf16.mxu0 0
    %1572 = vmatpush1.bf16.msra.mxu0 0
    %1573 = vmatprep.mubr.bf16.mxu0 0
    %1574 = vmatmul.mubr.bf16.gmra.mrb[0].mxu0 %v1518
    %v1575 = vpop.f32.mrb[0].mxu0
    %v1576 = vadd.f32 %v1400, %v1575
    %v1577 = vpop.f32.mrb[0].mxu0
    %v1578 = vpop.f32.mrb[0].mxu0
    %v1579 = vadd.f32 %v1405, %v1578
    %v1580 = vpop.f32.mrb[0].mxu0
    %1581 = vmatprep.mubr.bf16.mxu0 0
    %1582 = vmatmul.mubr.bf16.gmra.mrb[0].mxu0 %v1521
    %v1583 = vpop.f32.mrb[0].mxu0
    %v1584 = vadd.f32 %v1410, %v1583
    %v1585 = vpop.f32.mrb[0].mxu0
    %v1586 = vpop.f32.mrb[0].mxu0
    %v1587 = vadd.f32 %v1415, %v1586
    %v1588 = vpop.f32.mrb[0].mxu0
    %1589 = vmatprep.mubr.bf16.mxu0 0
    %1590 = vmatmul.mubr.bf16.gmra.mrb[0].mxu0 %v1524
    %v1591 = vpop.f32.mrb[0].mxu0
    %v1592 = vadd.f32 %v1420, %v1591
    %v1593 = vpop.f32.mrb[0].mxu0
    %v1594 = vpop.f32.mrb[0].mxu0
    %v1595 = vadd.f32 %v1425, %v1594
    %v1596 = vpop.f32.mrb[0].mxu0
    %1597 = vmatprep.mubr.bf16.mxu0 0
    %1598 = vmatmul.mubr.bf16.gmra.mrb[0].mxu0 %v1527
    %v1599 = vpop.f32.mrb[0].mxu0
    %v1600 = vadd.f32 %v1430, %v1599
    %v1601 = vpop.f32.mrb[0].mxu0
    %v1602 = vpop.f32.mrb[0].mxu0
    %v1603 = vadd.f32 %v1435, %v1602
    %v1604 = vpop.f32.mrb[0].mxu0
    %1605 = vmatprep.mubr.bf16.mxu0 0
    %1606 = vmatmul.mubr.bf16.gmra.mrb[0].mxu0 %v1530
    %v1607 = vpop.f32.mrb[0].mxu0
    %v1608 = vadd.f32 %v1440, %v1607
    %v1609 = vpop.f32.mrb[0].mxu0
    %v1610 = vpop.f32.mrb[0].mxu0
    %v1611 = vadd.f32 %v1445, %v1610
    %v1612 = vpop.f32.mrb[0].mxu0
    %1613 = vmatprep.mubr.bf16.mxu0 0
    %1614 = vmatmul.mubr.bf16.gmra.mrb[0].mxu0 %v1533
    %v1615 = vpop.f32.mrb[0].mxu0
    %v1616 = vadd.f32 %v1450, %v1615
    %v1617 = vpop.f32.mrb[0].mxu0
    %v1618 = vpop.f32.mrb[0].mxu0
    %v1619 = vadd.f32 %v1455, %v1618
    %v1620 = vpop.f32.mrb[0].mxu0
    %1621 = vmatprep.mubr.bf16.mxu0 0
    %1622 = vmatmul.mubr.bf16.gmra.mrb[0].mxu0 %v1536
    %v1623 = vpop.f32.mrb[0].mxu0
    %v1624 = vadd.f32 %v1460, %v1623
    %v1625 = vpop.f32.mrb[0].mxu0
    %v1626 = vpop.f32.mrb[0].mxu0
    %v1627 = vadd.f32 %v1465, %v1626
    %v1628 = vpop.f32.mrb[0].mxu0
    %1629 = vmatprep.mubr.bf16.mxu0 0
    %1630 = vmatmul.mubr.bf16.gmra.mrb[0].mxu0 %v1539
    %v1631 = vpop.f32.mrb[0].mxu0
    %v1632 = vadd.f32 %v1470, %v1631
    %v1633 = vpop.f32.mrb[0].mxu0
    %v1634 = vpop.f32.mrb[0].mxu0
    %v1635 = vadd.f32 %v1475, %v1634
    %v1636 = vpop.f32.mrb[0].mxu0
    %1637 = vdwg.mxu0
    %v1638 = vmax.f32 %v1576, 0.0
    %v1639 = vmax.f32 %v1579, 0.0
    %v1640 = vmax.f32 %v1584, 0.0
    %v1641 = vmax.f32 %v1587, 0.0
    %v1642 = vmax.f32 %v1592, 0.0
    %v1643 = vmax.f32 %v1595, 0.0
    %v1644 = vmax.f32 %v1600, 0.0
    %v1645 = vmax.f32 %v1603, 0.0
    %v1646 = vmax.f32 %v1608, 0.0
    %v1647 = vmax.f32 %v1611, 0.0
    %v1648 = vmax.f32 %v1616, 0.0
    %v1649 = vmax.f32 %v1619, 0.0
    %v1650 = vmax.f32 %v1624, 0.0
    %v1651 = vmax.f32 %v1627, 0.0
    %v1652 = vmax.f32 %v1632, 0.0
    %v1653 = vmax.f32 %v1635, 0.0
    %v1654 = vmul.f32 %v1167, %v1638
    %v1655 = vmul.f32 %v1168, %v1639
    %v1656 = vmul.f32 %v1169, %v1640
    %v1657 = vmul.f32 %v1170, %v1641
    %v1658 = vmul.f32 %v1171, %v1642
    %v1659 = vmul.f32 %v1172, %v1643
    %v1660 = vmul.f32 %v1173, %v1644
    %v1661 = vmul.f32 %v1174, %v1645
    %v1662 = vmul.f32 %v1175, %v1646
    %v1663 = vmul.f32 %v1176, %v1647
    %v1664 = vmul.f32 %v1177, %v1648
    %v1665 = vmul.f32 %v1178, %v1649
    %v1666 = vmul.f32 %v1179, %v1650
    %v1667 = vmul.f32 %v1180, %v1651
    %v1668 = vmul.f32 %v1181, %v1652
    %v1669 = vmul.f32 %v1182, %v1653
    %vm1670 = vcmask 64512
    %v1671 = vsel %vm1670, %v1654, 0.0
    %v1672 = vsel %vm1670, %v1655, 0.0
    %v1673 = vadd.f32 %v1671, %v1672
    %v1674 = vsel %vm1670, %v1656, 0.0
    %v1675 = vadd.f32 %v1673, %v1674
    %v1676 = vsel %vm1670, %v1657, 0.0
    %v1677 = vadd.f32 %v1675, %v1676
    %v1678 = vsel %vm1670, %v1658, 0.0
    %v1679 = vadd.f32 %v1677, %v1678
    %v1680 = vsel %vm1670, %v1659, 0.0
    %v1681 = vadd.f32 %v1679, %v1680
    %v1682 = vsel %vm1670, %v1660, 0.0
    %v1683 = vadd.f32 %v1681, %v1682
    %v1684 = vsel %vm1670, %v1661, 0.0
    %v1685 = vadd.f32 %v1683, %v1684
    %v1686 = vsel %vm1670, %v1662, 0.0
    %v1687 = vadd.f32 %v1685, %v1686
    %v1688 = vsel %vm1670, %v1663, 0.0
    %v1689 = vadd.f32 %v1687, %v1688
    %v1690 = vsel %vm1670, %v1664, 0.0
    %v1691 = vadd.f32 %v1689, %v1690
    %v1692 = vsel %vm1670, %v1665, 0.0
    %v1693 = vadd.f32 %v1691, %v1692
    %v1694 = vsel %vm1670, %v1666, 0.0
    %v1695 = vadd.f32 %v1693, %v1694
    %v1696 = vsel %vm1670, %v1667, 0.0
    %v1697 = vadd.f32 %v1695, %v1696
    %v1698 = vsel %vm1670, %v1668, 0.0
    %v1699 = vadd.f32 %v1697, %v1698
    %v1700 = vsel %vm1670, %v1669, 0.0
    %v1701 = vadd.f32 %v1699, %v1700
    %v1702 = vrot.slane %v1701, 4
    %v1703 = vadd.f32 %v1701, %v1702
    %v1704 = vrot.slane %v1703, 2
    %v1705 = vadd.f32 %v1703, %v1704
    %v1706 = vrot.slane %v1705, 1
    %v1707 = vadd.f32 %v1705, %v1706
    %v1708 = vadd.f32 %v1707, %v1216
    %vm1709 = vcmask 310448
    %v1710 = vsel %vm1709, %v1129, -inf
    %1711 = vmax.xlane.f32.xlu0 %v1710
    %v1712 = vpop.xlane.xlu0 %1711
    %v1713 = vsel %vm1709, %v1132, -inf
    %1714 = vmax.xlane.f32.xlu0 %v1713
    %v1715 = vpop.xlane.xlu0 %1714
    %v1716 = vsub.f32 %v1129, %v1712
    %v1717 = vsub.f32 %v1132, %v1715
    %v1718 = vmul.f32 %v1716, 1.442695
    %v1719 = vpow.pop %v1718
    %v1720 = vmul.f32 %v1717, 1.442695
    %v1721 = vpow.pop %v1720
    %1724 = vrot.lane.b32.xlu0 %v1719, 106
    %v1725 = vpop.permute.xlu0 %1724
    %1726 = vrot.lane.b32.xlu0 %v1721, 106
    %v1727 = vpop.permute.xlu0 %1726
    %v1730 = vsel %vm1246, %v1725, 0.0
    %1731 = vadd.xlane.f32.xlu0 %v1730
    %v1732 = vpop.xlane.xlu0 %1731
    %v1733 = vsel %vm1246, %v1727, 0.0
    %1734 = vadd.xlane.f32.xlu0 %v1733
    %v1735 = vpop.xlane.xlu0 %1734
    %v1736 = vrcp.pop %v1732
    %v1737 = vmul.f32 %v1719, %v1736
    %v1738 = vrcp.pop %v1735
    %v1739 = vmul.f32 %v1721, %v1738
    %v1740 = vpack.c.bf16 %v1739, %v1737
    %1741 = vrot.lane.b32.xlu0 %v320, 106
    %v1742 = vpop.permute.xlu0 %1741
    %1743 = vrot.lane.b32.xlu0 %v321, 106
    %v1744 = vpop.permute.xlu0 %1743
    %1745 = vrot.lane.b32.xlu0 %v322, 106
    %v1746 = vpop.permute.xlu0 %1745
    %1747 = vrot.lane.b32.xlu0 %v323, 106
    %v1748 = vpop.permute.xlu0 %1747
    %1750 = vrot.lane.b32.xlu0 %v1740, 106
    %v1751 = vpop.permute.xlu0 %1750
    %v1753 = vsel %vm1246, %v1742, 0
    %v1756 = vsel %vm1246, %v1744, 0
    %v1759 = vsel %vm1246, %v1746, 0
    %v1762 = vsel %vm1246, %v1748, 0
    %v1765 = vsel %vm1246, %v1751, 0
    %1767 = vmatprep.subr.bf16.mxu0 0
    %1768 = vmatpush1.bf16.xpose.msra.mxu0 %v1765
    %1769 = vmatprep.subr.bf16.mxu0 0
    %1770 = vmatpush1.bf16.xpose.msra.mxu0 0
    %1771 = vmatprep.subr.bf16.mxu0 0
    %1772 = vmatpush1.bf16.xpose.msra.mxu0 0
    %1773 = vmatprep.subr.bf16.mxu0 0
    %1774 = vmatpush1.bf16.xpose.msra.mxu0 0
    %1775 = vmatprep.subr.bf16.mxu0 0
    %1776 = vmatpush1.bf16.xpose.msra.mxu0 0
    %1777 = vmatprep.subr.bf16.mxu0 0
    %1778 = vmatpush1.bf16.xpose.msra.mxu0 0
    %1779 = vmatprep.subr.bf16.mxu0 0
    %1780 = vmatpush1.bf16.xpose.msra.mxu0 0
    %1781 = vmatprep.subr.bf16.mxu0 0
    %1782 = vmatpush1.bf16.xpose.msra.mxu0 0
    %1783 = vmatprep.subr.bf16.mxu0 0
    %1784 = vmatpush1.bf16.xpose.msra.mxu0 0
    %1785 = vmatprep.subr.bf16.mxu0 0
    %1786 = vmatpush1.bf16.xpose.msra.mxu0 0
    %1787 = vmatprep.subr.bf16.mxu0 0
    %1788 = vmatpush1.bf16.xpose.msra.mxu0 0
    %1789 = vmatprep.subr.bf16.mxu0 0
    %1790 = vmatpush1.bf16.xpose.msra.mxu0 0
    %1791 = vmatprep.subr.bf16.mxu0 0
    %1792 = vmatpush1.bf16.xpose.msra.mxu0 0
    %1793 = vmatprep.subr.bf16.mxu0 0
    %1794 = vmatpush1.bf16.xpose.msra.mxu0 0
    %1795 = vmatprep.subr.bf16.mxu0 0
    %1796 = vmatpush1.bf16.xpose.msra.mxu0 0
    %1797 = vmatprep.subr.bf16.mxu0 0
    %1798 = vmatpush1.bf16.xpose.msra.mxu0 0
    %1799 = vmatprep.mubr.bf16.mxu0 0
    %1800 = vmatmul.mubr.bf16.gmra.mrb[0].mxu0 %v1753
    %v1801 = vpop.f32.mrb[0].mxu0
    %v1802 = vadd.f32 0.0, %v1801
    %v1803 = vpop.f32.mrb[0].mxu0
    %v1804 = vpop.f32.mrb[0].mxu0
    %v1805 = vadd.f32 0.0, %v1804
    %v1806 = vpop.f32.mrb[0].mxu0
    %1807 = vmatprep.mubr.bf16.mxu0 0
    %1808 = vmatmul.mubr.bf16.gmra.mrb[0].mxu0 %v1756
    %v1809 = vpop.f32.mrb[0].mxu0
    %v1810 = vadd.f32 0.0, %v1809
    %v1811 = vpop.f32.mrb[0].mxu0
    %v1812 = vpop.f32.mrb[0].mxu0
    %v1813 = vadd.f32 0.0, %v1812
    %v1814 = vpop.f32.mrb[0].mxu0
    %1815 = vmatprep.mubr.bf16.mxu0 0
    %1816 = vmatmul.mubr.bf16.gmra.mrb[0].mxu0 %v1759
    %v1817 = vpop.f32.mrb[0].mxu0
    %v1818 = vadd.f32 0.0, %v1817
    %v1819 = vpop.f32.mrb[0].mxu0
    %v1820 = vpop.f32.mrb[0].mxu0
    %v1821 = vadd.f32 0.0, %v1820
    %v1822 = vpop.f32.mrb[0].mxu0
    %1823 = vmatprep.mubr.bf16.mxu0 0
    %1824 = vmatmul.mubr.bf16.gmra.mrb[0].mxu0 %v1762
    %v1825 = vpop.f32.mrb[0].mxu0
    %v1826 = vadd.f32 0.0, %v1825
    %v1827 = vpop.f32.mrb[0].mxu0
    %v1828 = vpop.f32.mrb[0].mxu0
    %v1829 = vadd.f32 0.0, %v1828
    %v1830 = vpop.f32.mrb[0].mxu0
    %1831 = vdwg.mxu0
    %1840 = vrot.lane.b32.xlu0 %v1802, 120
    %v1841 = vpop.permute.xlu0 %1840
    %1842 = vrot.lane.b32.xlu0 %v1805, 120
    %v1843 = vpop.permute.xlu0 %1842
    %1844 = vrot.lane.b32.xlu0 %v1810, 120
    %v1845 = vpop.permute.xlu0 %1844
    %1846 = vrot.lane.b32.xlu0 %v1813, 120
    %v1847 = vpop.permute.xlu0 %1846
    %1848 = vrot.lane.b32.xlu0 %v1818, 120
    %v1849 = vpop.permute.xlu0 %1848
    %1850 = vrot.lane.b32.xlu0 %v1821, 120
    %v1851 = vpop.permute.xlu0 %1850
    %1852 = vrot.lane.b32.xlu0 %v1826, 120
    %v1853 = vpop.permute.xlu0 %1852
    %1854 = vrot.lane.b32.xlu0 %v1829, 120
    %v1855 = vpop.permute.xlu0 %1854
    %v1864 = vsel %vm1217, %v1802, %v1841
    %v1865 = vsel %vm1218, %v1805, %v1843
    %v1866 = vsel %vm1219, %v1810, %v1845
    %v1867 = vsel %vm1220, %v1813, %v1847
    %v1868 = vsel %vm1221, %v1818, %v1849
    %v1869 = vsel %vm1222, %v1821, %v1851
    %v1870 = vsel %vm1223, %v1826, %v1853
    %v1871 = vsel %vm1224, %v1829, %v1855
    %v1872 = vpack.c.bf16 %v1865, %v1864
    %v1873 = vpack.c.bf16 %v1867, %v1866
    %v1874 = vpack.c.bf16 %v1869, %v1868
    %v1875 = vpack.c.bf16 %v1871, %v1870
    %1876 = vmatprep.subr.bf16.mxu0 0
    %1877 = vmatpush1.bf16.msra.mxu0 %v1872
    %1878 = vmatprep.subr.bf16.mxu0 0
    %1879 = vmatpush1.bf16.msra.mxu0 %v1873
    %1880 = vmatprep.subr.bf16.mxu0 0
    %1881 = vmatpush1.bf16.msra.mxu0 %v1874
    %1882 = vmatprep.subr.bf16.mxu0 0
    %1883 = vmatpush1.bf16.msra.mxu0 %v1875
    %1884 = vmatprep.subr.bf16.mxu0 0
    %1885 = vmatpush1.bf16.msra.mxu0 0
    %1886 = vmatprep.subr.bf16.mxu0 0
    %1887 = vmatpush1.bf16.msra.mxu0 0
    %1888 = vmatprep.subr.bf16.mxu0 0
    %1889 = vmatpush1.bf16.msra.mxu0 0
    %1890 = vmatprep.subr.bf16.mxu0 0
    %1891 = vmatpush1.bf16.msra.mxu0 0
    %1892 = vmatprep.subr.bf16.mxu0 0
    %1893 = vmatpush1.bf16.msra.mxu0 0
    %1894 = vmatprep.subr.bf16.mxu0 0
    %1895 = vmatpush1.bf16.msra.mxu0 0
    %1896 = vmatprep.subr.bf16.mxu0 0
    %1897 = vmatpush1.bf16.msra.mxu0 0
    %1898 = vmatprep.subr.bf16.mxu0 0
    %1899 = vmatpush1.bf16.msra.mxu0 0
    %1900 = vmatprep.subr.bf16.mxu0 0
    %1901 = vmatpush1.bf16.msra.mxu0 0
    %1902 = vmatprep.subr.bf16.mxu0 0
    %1903 = vmatpush1.bf16.msra.mxu0 0
    %1904 = vmatprep.subr.bf16.mxu0 0
    %1905 = vmatpush1.bf16.msra.mxu0 0
    %1906 = vmatprep.subr.bf16.mxu0 0
    %1907 = vmatpush1.bf16.msra.mxu0 0
    %1908 = vmatprep.mubr.bf16.mxu0 0
    %1909 = vmatmul.mubr.bf16.gmra.mrb[0].mxu0 %v1518
    %v1910 = vpop.f32.mrb[0].mxu0
    %v1911 = vadd.f32 %v1400, %v1910
    %v1912 = vpop.f32.mrb[0].mxu0
    %v1913 = vpop.f32.mrb[0].mxu0
    %v1914 = vadd.f32 %v1405, %v1913
    %v1915 = vpop.f32.mrb[0].mxu0
    %1916 = vmatprep.mubr.bf16.mxu0 0
    %1917 = vmatmul.mubr.bf16.gmra.mrb[0].mxu0 %v1521
    %v1918 = vpop.f32.mrb[0].mxu0
    %v1919 = vadd.f32 %v1410, %v1918
    %v1920 = vpop.f32.mrb[0].mxu0
    %v1921 = vpop.f32.mrb[0].mxu0
    %v1922 = vadd.f32 %v1415, %v1921
    %v1923 = vpop.f32.mrb[0].mxu0
    %1924 = vmatprep.mubr.bf16.mxu0 0
    %1925 = vmatmul.mubr.bf16.gmra.mrb[0].mxu0 %v1524
    %v1926 = vpop.f32.mrb[0].mxu0
    %v1927 = vadd.f32 %v1420, %v1926
    %v1928 = vpop.f32.mrb[0].mxu0
    %v1929 = vpop.f32.mrb[0].mxu0
    %v1930 = vadd.f32 %v1425, %v1929
    %v1931 = vpop.f32.mrb[0].mxu0
    %1932 = vmatprep.mubr.bf16.mxu0 0
    %1933 = vmatmul.mubr.bf16.gmra.mrb[0].mxu0 %v1527
    %v1934 = vpop.f32.mrb[0].mxu0
    %v1935 = vadd.f32 %v1430, %v1934
    %v1936 = vpop.f32.mrb[0].mxu0
    %v1937 = vpop.f32.mrb[0].mxu0
    %v1938 = vadd.f32 %v1435, %v1937
    %v1939 = vpop.f32.mrb[0].mxu0
    %1940 = vmatprep.mubr.bf16.mxu0 0
    %1941 = vmatmul.mubr.bf16.gmra.mrb[0].mxu0 %v1530
    %v1942 = vpop.f32.mrb[0].mxu0
    %v1943 = vadd.f32 %v1440, %v1942
    %v1944 = vpop.f32.mrb[0].mxu0
    %v1945 = vpop.f32.mrb[0].mxu0
    %v1946 = vadd.f32 %v1445, %v1945
    %v1947 = vpop.f32.mrb[0].mxu0
    %1948 = vmatprep.mubr.bf16.mxu0 0
    %1949 = vmatmul.mubr.bf16.gmra.mrb[0].mxu0 %v1533
    %v1950 = vpop.f32.mrb[0].mxu0
    %v1951 = vadd.f32 %v1450, %v1950
    %v1952 = vpop.f32.mrb[0].mxu0
    %v1953 = vpop.f32.mrb[0].mxu0
    %v1954 = vadd.f32 %v1455, %v1953
    %v1955 = vpop.f32.mrb[0].mxu0
    %1956 = vmatprep.mubr.bf16.mxu0 0
    %1957 = vmatmul.mubr.bf16.gmra.mrb[0].mxu0 %v1536
    %v1958 = vpop.f32.mrb[0].mxu0
    %v1959 = vadd.f32 %v1460, %v1958
    %v1960 = vpop.f32.mrb[0].mxu0
    %v1961 = vpop.f32.mrb[0].mxu0
    %v1962 = vadd.f32 %v1465, %v1961
    %v1963 = vpop.f32.mrb[0].mxu0
    %1964 = vmatprep.mubr.bf16.mxu0 0
    %1965 = vmatmul.mubr.bf16.gmra.mrb[0].mxu0 %v1539
    %v1966 = vpop.f32.mrb[0].mxu0
    %v1967 = vadd.f32 %v1470, %v1966
    %v1968 = vpop.f32.mrb[0].mxu0
    %v1969 = vpop.f32.mrb[0].mxu0
    %v1970 = vadd.f32 %v1475, %v1969
    %v1971 = vpop.f32.mrb[0].mxu0
    %1972 = vdwg.mxu0
    %v1973 = vmax.f32 %v1911, 0.0
    %v1974 = vmax.f32 %v1914, 0.0
    %v1975 = vmax.f32 %v1919, 0.0
    %v1976 = vmax.f32 %v1922, 0.0
    %v1977 = vmax.f32 %v1927, 0.0
    %v1978 = vmax.f32 %v1930, 0.0
    %v1979 = vmax.f32 %v1935, 0.0
    %v1980 = vmax.f32 %v1938, 0.0
    %v1981 = vmax.f32 %v1943, 0.0
    %v1982 = vmax.f32 %v1946, 0.0
    %v1983 = vmax.f32 %v1951, 0.0
    %v1984 = vmax.f32 %v1954, 0.0
    %v1985 = vmax.f32 %v1959, 0.0
    %v1986 = vmax.f32 %v1962, 0.0
    %v1987 = vmax.f32 %v1967, 0.0
    %v1988 = vmax.f32 %v1970, 0.0
    %v1989 = vmul.f32 %v1167, %v1973
    %v1990 = vmul.f32 %v1168, %v1974
    %v1991 = vmul.f32 %v1169, %v1975
    %v1992 = vmul.f32 %v1170, %v1976
    %v1993 = vmul.f32 %v1171, %v1977
    %v1994 = vmul.f32 %v1172, %v1978
    %v1995 = vmul.f32 %v1173, %v1979
    %v1996 = vmul.f32 %v1174, %v1980
    %v1997 = vmul.f32 %v1175, %v1981
    %v1998 = vmul.f32 %v1176, %v1982
    %v1999 = vmul.f32 %v1177, %v1983
    %v2000 = vmul.f32 %v1178, %v1984
    %v2001 = vmul.f32 %v1179, %v1985
    %v2002 = vmul.f32 %v1180, %v1986
    %v2003 = vmul.f32 %v1181, %v1987
    %v2004 = vmul.f32 %v1182, %v1988
    %v2005 = vsel %vm1670, %v1989, 0.0
    %v2006 = vsel %vm1670, %v1990, 0.0
    %v2007 = vadd.f32 %v2005, %v2006
    %v2008 = vsel %vm1670, %v1991, 0.0
    %v2009 = vadd.f32 %v2007, %v2008
    %v2010 = vsel %vm1670, %v1992, 0.0
    %v2011 = vadd.f32 %v2009, %v2010
    %v2012 = vsel %vm1670, %v1993, 0.0
    %v2013 = vadd.f32 %v2011, %v2012
    %v2014 = vsel %vm1670, %v1994, 0.0
    %v2015 = vadd.f32 %v2013, %v2014
    %v2016 = vsel %vm1670, %v1995, 0.0
    %v2017 = vadd.f32 %v2015, %v2016
    %v2018 = vsel %vm1670, %v1996, 0.0
    %v2019 = vadd.f32 %v2017, %v2018
    %v2020 = vsel %vm1670, %v1997, 0.0
    %v2021 = vadd.f32 %v2019, %v2020
    %v2022 = vsel %vm1670, %v1998, 0.0
    %v2023 = vadd.f32 %v2021, %v2022
    %v2024 = vsel %vm1670, %v1999, 0.0
    %v2025 = vadd.f32 %v2023, %v2024
    %v2026 = vsel %vm1670, %v2000, 0.0
    %v2027 = vadd.f32 %v2025, %v2026
    %v2028 = vsel %vm1670, %v2001, 0.0
    %v2029 = vadd.f32 %v2027, %v2028
    %v2030 = vsel %vm1670, %v2002, 0.0
    %v2031 = vadd.f32 %v2029, %v2030
    %v2032 = vsel %vm1670, %v2003, 0.0
    %v2033 = vadd.f32 %v2031, %v2032
    %v2034 = vsel %vm1670, %v2004, 0.0
    %v2035 = vadd.f32 %v2033, %v2034
    %v2036 = vrot.slane %v2035, 4
    %v2037 = vadd.f32 %v2035, %v2036
    %v2038 = vrot.slane %v2037, 2
    %v2039 = vadd.f32 %v2037, %v2038
    %v2040 = vrot.slane %v2039, 1
    %v2041 = vadd.f32 %v2039, %v2040
    %v2042 = vadd.f32 %v2041, %v1216
    %v2044 = vrot.slane %v2042, 7
    %vm2046 = vcmask 1040384
    %v2047 = vsel %vm2046, %v1708, %v2044
    %vm2048 = vcmask 58368
    %2049 = vst.msk [vmem:[#allocation2] sm:$0x3] %vm2048, %v2047
    %v2050 = vld [vmem:[%s1] sm:$0x3]
    %v2051 = vmax.f32 %v2047, 0.0
    %v2052 = vmul.f32 %v2047, %v2050
    %v2053 = vsub.f32 %v2051, %v2052
    %v2054 = vand.u32 2147483647, %v2047
    %v2055 = vsub.f32 0.0, %v2054
    %v2056 = vmul.f32 %v2055, 1.442695
    %v2057 = vpow.pop %v2056
    %v2058 = vadd.f32 %v2057, 1.0
    %v2059 = vlog2.pop %v2058
    %v2060 = vmul.f32 %v2059, 0.6931472
    %v2061 = vadd.f32 %v2053, %v2060
    %v2062 = vsel %vm2048, %v2061, 0.0
    %2063 = vadd.xlane.f32.xlu0 %v2062
    %v2064 = vpop.xlane.xlu0 %2063
    %vm2065 = vcmask 1041408
    %v2066 = vsel %vm2065, %v2064, 0.0
    %v2067 = vrot.slane %v2066, 4
    %v2068 = vadd.f32 %v2066, %v2067
    %v2069 = vrot.slane %v2068, 2
    %v2070 = vadd.f32 %v2068, %v2069
    %v2071 = vrot.slane %v2070, 1
    %v2072 = vadd.f32 %v2070, %v2071
    %v2073 = vmul.f32 %v2072, 0.0625
    %vm2074 = vcmask 0
    %2075 = vst.msk [vmem:[#allocation4] sm:$0x1] %vm2074, %v2073
    // Predicated region
    $region22: #{multicnn_forward.1} parent=1 // pred_check
      _
    $region23: #{multicnn_forward.1} parent=1 // pred_check_branch
      %2077 = sbr.rel (0) target = $region25
    $region24: #{multicnn_forward.1} parent=1 // pred_region
      %s2079 = ssub.s32 32, 32
      %2080 = vsyncadd [#allocation3], %s2079
      %s2082 = sshll.u32 [#allocation2], 4
      %s2083 = int_to_ptr.vmem [resolvable:$true] %s2082
      %2085 = dma.vmem_to_hbm [thread:$0]  %s2083, 32, %s5, [#allocation3]
    $region25: #{multicnn_forward.1} parent=1 // pred_fallthru
      _
    // Predicated region
    $region26: #{multicnn_forward.1} parent=1 // pred_check
      _
    $region27: #{multicnn_forward.1} parent=1 // pred_check_branch
      %2087 = sbr.rel (0) target = $region29
    $region28: #{multicnn_forward.1} parent=1 // pred_region
      %s2089 = ssub.s32 16, 16
      %2090 = vsyncadd [#allocation5], %s2089
      %s2092 = sshll.u32 [#allocation4], 4
      %s2093 = int_to_ptr.vmem [resolvable:$true] %s2092
      %2095 = dma.vmem_to_hbm [thread:$0]  %s2093, 16, %s6, [#allocation5]
    $region29: #{multicnn_forward.1} parent=1 // pred_fallthru
      _
    // Predicated region
    $region30: #{multicnn_forward.1} parent=1 // pred_check
      _
    $region31: #{multicnn_forward.1} parent=1 // pred_check_branch
      %2097 = sbr.rel (0) target = $region33
    $region32: #{multicnn_forward.1} parent=1 // pred_region
      %2098 = dma.done [#allocation3], 32
    $region33: #{multicnn_forward.1} parent=1 // pred_fallthru
      _
    // Predicated region
    $region34: #{multicnn_forward.1} parent=1 // pred_check
      _
    $region35: #{multicnn_forward.1} parent=1 // pred_check_branch
      %2100 = sbr.rel (0) target = $region37
    $region36: #{multicnn_forward.1} parent=1 // pred_region
      %2101 = dma.done [#allocation5], 16
    $region37: #{multicnn_forward.1} parent=1 // pred_fallthru
      _
    %2102 = vsyncpa [#allocation3], 1
    %2103 = vsyncpa [#allocation5], 1

</llo_original>
